<compile_context>
chip_gen: v6e
topology: v6e:2x2x1
jax: 0.10.0
libtpu: 0.0.40
codegen_flags: <defaults>
</compile_context>

<pallas_src>
import functools

import jax
import jax.numpy as jnp
import numpy as np
from jax import lax
from jax.experimental import pallas as pl
from jax.experimental.pallas import tpu as pltpu


def _conv_stats_kernel(x_ref, w_ref, mask_ref, bias_ref,
                       y_ref, psum_ref, psq_ref, *, H, W):
    """Pass 1: conv3x3(pad=1)+bias for one image + per-image BN partial stats.

    x_ref:    (1, C_in, HW)     f32  lane-dense activations of one image
    w_ref:    (9, C_out, C_in)  bf16 per-tap weight matrices (tap = (dy+1)*3 + (dx+1))
    mask_ref: (9, HW)           f32  0/1 boundary masks per tap (shape-only constants)
    bias_ref: (C_out, 1)        f32  conv bias
    y_ref:    (1, C_out, HW)    f32  conv output (pre-BN)
    psum_ref: (1, C_out, 1)     f32  per-image sum(y)
    psq_ref:  (1, C_out, 1)     f32  per-image sum(y*y)
    """
    HW = H * W
    x = x_ref[0]                 # (C_in, HW) f32
    w_all = w_ref[...]           # (9, C_out, C_in) bf16
    masks = mask_ref[...]        # (9, HW) f32

    acc = None
    tap = 0
    for dy in (-1, 0, 1):
        for dx in (-1, 0, 1):
            if dy == 0 and dx == 0:
                tap_x = x.astype(jnp.bfloat16)          # center tap: no roll, no mask
            else:
                shift = (-(dy * W + dx)) % HW           # static; roll sits on the XLU
                shifted = pltpu.roll(x, shift=shift, axis=1)
                # mask in f32 (v5e VPU has no bf16), then cast operands to bf16 for MXU
                tap_x = (shifted * masks[tap:tap + 1, :]).astype(jnp.bfloat16)
            part = jnp.dot(w_all[tap], tap_x, preferred_element_type=jnp.float32)
            acc = part if acc is None else acc + part   # per-tap MXU accumulate
            tap += 1
    # NOTE: at these tiny channel counts (C_in=C_out=4) the MXU is mostly padding; for
    # such shapes 9 broadcast-FMAs on the VPU would also do, but this structure is the
    # right one for real channel counts (contraction = C_in per tap, C_out on sublanes).

    y = acc + bias_ref[...]                             # (C_out, HW) f32
    y_ref[0] = y
    # single-pass stats: sum and sum of squares (f32 accumulation)
    psum_ref[0] = jnp.sum(y, axis=1, keepdims=True)
    psq_ref[0] = jnp.sum(y * y, axis=1, keepdims=True)


def _bn_relu_kernel(y_ref, sum_ref, sq_ref, gamma_ref, beta_ref, o_ref, *, count, eps):
    """Pass 2: fold BN into one scale/shift and apply ReLU, one image per grid step."""
    inv_n = 1.0 / count
    mean = sum_ref[...] * inv_n                          # (C_out, 1)
    var = sq_ref[...] * inv_n - mean * mean              # biased batch variance, f32
    scale = gamma_ref[...] * lax.rsqrt(var + eps)        # rsqrt -> EUP slot
    shift = beta_ref[...] - mean * scale
    o_ref[0] = jnp.maximum(y_ref[0] * scale + shift, 0.0)


@functools.partial(jax.jit, static_argnames=("eps",))
def single_conv(x, weight, bias, gamma, beta, *, eps=1e-5):
    """x: (B, C_in, H, W) NCHW; weight: (C_out, C_in, 3, 3) OIHW; bias/gamma/beta: (C_out,)."""
    B, C_in, H, W = x.shape
    C_out = weight.shape[0]
    HW = H * W  # lane axis per image; 256 here (multiple of 128 -> unmasked lane-dense IO)

    # Free reshape, no HBM transpose of activations.
    x_flat = x.reshape(B, C_in, HW).astype(jnp.float32)
    # Per-tap weight matrices (tiny tensor; transpose cost negligible), bf16 for the MXU.
    w9 = jnp.transpose(weight, (2, 3, 0, 1)).reshape(9, C_out, C_in).astype(jnp.bfloat16)
    b_col = bias.reshape(C_out, 1).astype(jnp.float32)
    g_col = gamma.reshape(C_out, 1).astype(jnp.float32)
    beta_col = beta.reshape(C_out, 1).astype(jnp.float32)

    # Boundary masks for the 9 taps: shape-only constants, baked once at trace time.
    hh, ww = np.meshgrid(np.arange(H), np.arange(W), indexing="ij")
    m = []
    for dy in (-1, 0, 1):
        for dx in (-1, 0, 1):
            ok = (hh + dy >= 0) & (hh + dy < H) & (ww + dx >= 0) & (ww + dx < W)
            m.append(ok.reshape(-1))
    masks = jnp.asarray(np.stack(m).astype(np.float32))              # (9, HW)

    cparams = pltpu.CompilerParams(
        dimension_semantics=("parallel",),          # independent per-image work (2 TCs on v7x)
        vmem_limit_bytes=32 * 1024 * 1024,          # explicit, with headroom (v7x: 64 MiB phys)
    )

    # ---- pass 1: conv + bias + per-image partial BN statistics ----
    conv_kernel = functools.partial(_conv_stats_kernel, H=H, W=W)
    y_conv, psum, psq = pl.pallas_call(
        conv_kernel,
        grid=(B,),
        in_specs=[
            pl.BlockSpec((1, C_in, HW), lambda b: (b, 0, 0)),        # x (one image)
            pl.BlockSpec((9, C_out, C_in), lambda b: (0, 0, 0)),     # weights (resident)
            pl.BlockSpec((9, HW), lambda b: (0, 0)),                 # boundary masks
            pl.BlockSpec((C_out, 1), lambda b: (0, 0)),              # conv bias
        ],
        out_specs=(
            pl.BlockSpec((1, C_out, HW), lambda b: (b, 0, 0)),       # conv output
            pl.BlockSpec((1, C_out, 1), lambda b: (b, 0, 0)),        # partial sum
            pl.BlockSpec((1, C_out, 1), lambda b: (b, 0, 0)),        # partial sumsq
        ),
        out_shape=(
            jax.ShapeDtypeStruct((B, C_out, HW), jnp.float32),
            jax.ShapeDtypeStruct((B, C_out, 1), jnp.float32),
            jax.ShapeDtypeStruct((B, C_out, 1), jnp.float32),
        ),
        compiler_params=cparams,
    )(x_flat, w9, masks, b_col)

    # Tiny cross-image reduction of the partial stats (B*C_out elements).
    sum_c = jnp.sum(psum, axis=0)    # (C_out, 1)
    sq_c = jnp.sum(psq, axis=0)      # (C_out, 1)

    # ---- pass 2: BN (folded scale/shift) + ReLU, in place over the conv output ----
    bn_kernel = functools.partial(_bn_relu_kernel, count=float(B * HW), eps=float(eps))
    out_flat = pl.pallas_call(
        bn_kernel,
        grid=(B,),
        in_specs=[
            pl.BlockSpec((1, C_out, HW), lambda b: (b, 0, 0)),       # y (aliased to output)
            pl.BlockSpec((C_out, 1), lambda b: (0, 0)),              # sum
            pl.BlockSpec((C_out, 1), lambda b: (0, 0)),              # sumsq
            pl.BlockSpec((C_out, 1), lambda b: (0, 0)),              # gamma
            pl.BlockSpec((C_out, 1), lambda b: (0, 0)),              # beta
        ],
        out_specs=pl.BlockSpec((1, C_out, HW), lambda b: (b, 0, 0)),
        out_shape=jax.ShapeDtypeStruct((B, C_out, HW), jnp.float32),
        input_output_aliases={0: 0},                                 # overwrite y in place
        compiler_params=cparams,
    )(y_conv, sum_c, sq_c, g_col, beta_col)

    return out_flat.reshape(B, C_out, H, W)   # free reshape back to NCHW


# ---------------- pure-JAX reference (correctness check only) ----------------

def _ref_forward(x, w, b, gamma, beta, eps):
    y = lax.conv_general_dilated(
        x, w, window_strides=(1, 1), padding=((1, 1), (1, 1)),
        dimension_numbers=("NCHW", "OIHW", "NCHW"))
    y = y + b[None, :, None, None]
    mean = jnp.mean(y, axis=(0, 2, 3), keepdims=True)
    var = jnp.mean((y - mean) ** 2, axis=(0, 2, 3), keepdims=True)
    y = (y - mean) * lax.rsqrt(var + eps) * gamma[None, :, None, None] \
        + beta[None, :, None, None]
    return jnp.maximum(y, 0.0)


if __name__ == "__main__":
    B, C_in, C_out, H, W = 2, 4, 4, 16, 16
    eps = 1e-5

    key = jax.random.PRNGKey(0)
    kx, kw, kb, kg, kbe = jax.random.split(key, 5)
    x = jax.random.normal(kx, (B, C_in, H, W), jnp.float32)
    weight = 0.2 * jax.random.normal(kw, (C_out, C_in, 3, 3), jnp.float32)
    bias = 0.1 * jax.random.normal(kb, (C_out,), jnp.float32)
    gamma = 1.0 + 0.1 * jax.random.normal(kg, (C_out,), jnp.float32)
    beta = 0.1 * jax.random.normal(kbe, (C_out,), jnp.float32)

    out = jax.block_until_ready(single_conv(x, weight, bias, gamma, beta, eps=eps))

    ref = _ref_forward(x, weight, bias, gamma, beta, eps)
    # Tolerance dominated by bf16 rounding of the matmul operands (accumulation is f32);
    # a structural bug (wrong tap/roll/mask) would produce O(1) errors and still fail.
    np.testing.assert_allclose(np.asarray(out), np.asarray(ref), rtol=5e-2, atol=5e-2)

    print("KERNEL_OK")
</pallas_src>

<mosaic_0001>
module attributes {stable_mosaic.version = 11 : i64} {
  func.func @_conv_stats_kernel(%arg0: i32, %arg1: memref<1x4x256xf32, #tpu.memory_space<vmem>>, %arg2: memref<9x4x4xbf16, #tpu.memory_space<vmem>>, %arg3: memref<9x256xf32, #tpu.memory_space<vmem>>, %arg4: memref<4x1xf32, #tpu.memory_space<vmem>>, %arg5: memref<1x4x256xf32, #tpu.memory_space<vmem>>, %arg6: memref<1x4x1xf32, #tpu.memory_space<vmem>>, %arg7: memref<1x4x1xf32, #tpu.memory_space<vmem>>) attributes {dimension_semantics = [#tpu.dimension_semantics<parallel>], iteration_bounds = array<i64: 2>, scalar_prefetch = 0 : i64, scratch_operands = 0 : i64, tpu.core_type = #tpu.core_type<tc>, window_params = [{transform_indices = @transform_0, window_bounds = array<i64: 1, 4, 256>}, {pipeline_mode = #tpu.pipeline_mode<synchronous>, transform_indices = @transform_1, window_bounds = array<i64: 9, 4, 4>}, {pipeline_mode = #tpu.pipeline_mode<synchronous>, transform_indices = @transform_2, window_bounds = array<i64: 9, 256>}, {pipeline_mode = #tpu.pipeline_mode<synchronous>, transform_indices = @transform_3, window_bounds = array<i64: 4, 1>}, {transform_indices = @transform_4, window_bounds = array<i64: 1, 4, 256>}, {transform_indices = @transform_5, window_bounds = array<i64: 1, 4, 1>}, {transform_indices = @transform_6, window_bounds = array<i64: 1, 4, 1>}]} {
    %c0 = arith.constant 0 : index
    %c0_0 = arith.constant 0 : index
    %c0_1 = arith.constant 0 : index
    %0 = vector.load %arg1[%c0, %c0_0, %c0_1] : memref<1x4x256xf32, #tpu.memory_space<vmem>>, vector<1x4x256xf32>
    %1 = vector.shape_cast %0 : vector<1x4x256xf32> to vector<4x256xf32>
    %c0_2 = arith.constant 0 : index
    %c0_3 = arith.constant 0 : index
    %c0_4 = arith.constant 0 : index
    %2 = vector.load %arg2[%c0_2, %c0_3, %c0_4] : memref<9x4x4xbf16, #tpu.memory_space<vmem>>, vector<9x4x4xbf16>
    %c0_5 = arith.constant 0 : index
    %c0_6 = arith.constant 0 : index
    %3 = vector.load %arg3[%c0_5, %c0_6] : memref<9x256xf32, #tpu.memory_space<vmem>>, vector<9x256xf32>
    %c17_i32 = arith.constant 17 : i32
    %4 = tpu.dynamic_rotate %1 by %c17_i32 dim 1 : vector<4x256xf32>, i32 -> vector<4x256xf32>
    %5 = vector.extract_strided_slice %3 {offsets = [0, 0], sizes = [1, 256], strides = [1, 1]} : vector<9x256xf32> to vector<1x256xf32>
    %6 = vector.broadcast %5 : vector<1x256xf32> to vector<4x256xf32>
    %7 = arith.mulf %4, %6 : vector<4x256xf32>
    %8 = arith.truncf %7 : vector<4x256xf32> to vector<4x256xbf16>
    %9 = vector.extract_strided_slice %2 {offsets = [0, 0, 0], sizes = [1, 4, 4], strides = [1, 1, 1]} : vector<9x4x4xbf16> to vector<1x4x4xbf16>
    %10 = vector.shape_cast %9 : vector<1x4x4xbf16> to vector<4x4xbf16>
    %cst = arith.constant dense<0.000000e+00> : vector<4x256xf32>
    %11 = tpu.matmul %10, %8, %cst {dimension_numbers = #tpu.dot_dimension_numbers<[1], [0], [0], [1], [0, 0, 1, 1], [], []>} : vector<4x4xbf16>, vector<4x256xbf16>, vector<4x256xf32> -> vector<4x256xf32>
    %c16_i32 = arith.constant 16 : i32
    %12 = tpu.dynamic_rotate %1 by %c16_i32 dim 1 : vector<4x256xf32>, i32 -> vector<4x256xf32>
    %13 = vector.extract_strided_slice %3 {offsets = [1, 0], sizes = [1, 256], strides = [1, 1]} : vector<9x256xf32> to vector<1x256xf32>
    %14 = vector.broadcast %13 : vector<1x256xf32> to vector<4x256xf32>
    %15 = arith.mulf %12, %14 : vector<4x256xf32>
    %16 = arith.truncf %15 : vector<4x256xf32> to vector<4x256xbf16>
    %17 = vector.extract_strided_slice %2 {offsets = [1, 0, 0], sizes = [1, 4, 4], strides = [1, 1, 1]} : vector<9x4x4xbf16> to vector<1x4x4xbf16>
    %18 = vector.shape_cast %17 : vector<1x4x4xbf16> to vector<4x4xbf16>
    %cst_7 = arith.constant dense<0.000000e+00> : vector<4x256xf32>
    %19 = tpu.matmul %18, %16, %cst_7 {dimension_numbers = #tpu.dot_dimension_numbers<[1], [0], [0], [1], [0, 0, 1, 1], [], []>} : vector<4x4xbf16>, vector<4x256xbf16>, vector<4x256xf32> -> vector<4x256xf32>
    %20 = arith.addf %11, %19 : vector<4x256xf32>
    %c15_i32 = arith.constant 15 : i32
    %21 = tpu.dynamic_rotate %1 by %c15_i32 dim 1 : vector<4x256xf32>, i32 -> vector<4x256xf32>
    %22 = vector.extract_strided_slice %3 {offsets = [2, 0], sizes = [1, 256], strides = [1, 1]} : vector<9x256xf32> to vector<1x256xf32>
    %23 = vector.broadcast %22 : vector<1x256xf32> to vector<4x256xf32>
    %24 = arith.mulf %21, %23 : vector<4x256xf32>
    %25 = arith.truncf %24 : vector<4x256xf32> to vector<4x256xbf16>
    %26 = vector.extract_strided_slice %2 {offsets = [2, 0, 0], sizes = [1, 4, 4], strides = [1, 1, 1]} : vector<9x4x4xbf16> to vector<1x4x4xbf16>
    %27 = vector.shape_cast %26 : vector<1x4x4xbf16> to vector<4x4xbf16>
    %cst_8 = arith.constant dense<0.000000e+00> : vector<4x256xf32>
    %28 = tpu.matmul %27, %25, %cst_8 {dimension_numbers = #tpu.dot_dimension_numbers<[1], [0], [0], [1], [0, 0, 1, 1], [], []>} : vector<4x4xbf16>, vector<4x256xbf16>, vector<4x256xf32> -> vector<4x256xf32>
    %29 = arith.addf %20, %28 : vector<4x256xf32>
    %c1_i32 = arith.constant 1 : i32
    %30 = tpu.dynamic_rotate %1 by %c1_i32 dim 1 : vector<4x256xf32>, i32 -> vector<4x256xf32>
    %31 = vector.extract_strided_slice %3 {offsets = [3, 0], sizes = [1, 256], strides = [1, 1]} : vector<9x256xf32> to vector<1x256xf32>
    %32 = vector.broadcast %31 : vector<1x256xf32> to vector<4x256xf32>
    %33 = arith.mulf %30, %32 : vector<4x256xf32>
    %34 = arith.truncf %33 : vector<4x256xf32> to vector<4x256xbf16>
    %35 = vector.extract_strided_slice %2 {offsets = [3, 0, 0], sizes = [1, 4, 4], strides = [1, 1, 1]} : vector<9x4x4xbf16> to vector<1x4x4xbf16>
    %36 = vector.shape_cast %35 : vector<1x4x4xbf16> to vector<4x4xbf16>
    %cst_9 = arith.constant dense<0.000000e+00> : vector<4x256xf32>
    %37 = tpu.matmul %36, %34, %cst_9 {dimension_numbers = #tpu.dot_dimension_numbers<[1], [0], [0], [1], [0, 0, 1, 1], [], []>} : vector<4x4xbf16>, vector<4x256xbf16>, vector<4x256xf32> -> vector<4x256xf32>
    %38 = arith.addf %29, %37 : vector<4x256xf32>
    %39 = arith.truncf %1 : vector<4x256xf32> to vector<4x256xbf16>
    %40 = vector.extract_strided_slice %2 {offsets = [4, 0, 0], sizes = [1, 4, 4], strides = [1, 1, 1]} : vector<9x4x4xbf16> to vector<1x4x4xbf16>
    %41 = vector.shape_cast %40 : vector<1x4x4xbf16> to vector<4x4xbf16>
    %cst_10 = arith.constant dense<0.000000e+00> : vector<4x256xf32>
    %42 = tpu.matmul %41, %39, %cst_10 {dimension_numbers = #tpu.dot_dimension_numbers<[1], [0], [0], [1], [0, 0, 1, 1], [], []>} : vector<4x4xbf16>, vector<4x256xbf16>, vector<4x256xf32> -> vector<4x256xf32>
    %43 = arith.addf %38, %42 : vector<4x256xf32>
    %c255_i32 = arith.constant 255 : i32
    %44 = tpu.dynamic_rotate %1 by %c255_i32 dim 1 : vector<4x256xf32>, i32 -> vector<4x256xf32>
    %45 = vector.extract_strided_slice %3 {offsets = [5, 0], sizes = [1, 256], strides = [1, 1]} : vector<9x256xf32> to vector<1x256xf32>
    %46 = vector.broadcast %45 : vector<1x256xf32> to vector<4x256xf32>
    %47 = arith.mulf %44, %46 : vector<4x256xf32>
    %48 = arith.truncf %47 : vector<4x256xf32> to vector<4x256xbf16>
    %49 = vector.extract_strided_slice %2 {offsets = [5, 0, 0], sizes = [1, 4, 4], strides = [1, 1, 1]} : vector<9x4x4xbf16> to vector<1x4x4xbf16>
    %50 = vector.shape_cast %49 : vector<1x4x4xbf16> to vector<4x4xbf16>
    %cst_11 = arith.constant dense<0.000000e+00> : vector<4x256xf32>
    %51 = tpu.matmul %50, %48, %cst_11 {dimension_numbers = #tpu.dot_dimension_numbers<[1], [0], [0], [1], [0, 0, 1, 1], [], []>} : vector<4x4xbf16>, vector<4x256xbf16>, vector<4x256xf32> -> vector<4x256xf32>
    %52 = arith.addf %43, %51 : vector<4x256xf32>
    %c241_i32 = arith.constant 241 : i32
    %53 = tpu.dynamic_rotate %1 by %c241_i32 dim 1 : vector<4x256xf32>, i32 -> vector<4x256xf32>
    %54 = vector.extract_strided_slice %3 {offsets = [6, 0], sizes = [1, 256], strides = [1, 1]} : vector<9x256xf32> to vector<1x256xf32>
    %55 = vector.broadcast %54 : vector<1x256xf32> to vector<4x256xf32>
    %56 = arith.mulf %53, %55 : vector<4x256xf32>
    %57 = arith.truncf %56 : vector<4x256xf32> to vector<4x256xbf16>
    %58 = vector.extract_strided_slice %2 {offsets = [6, 0, 0], sizes = [1, 4, 4], strides = [1, 1, 1]} : vector<9x4x4xbf16> to vector<1x4x4xbf16>
    %59 = vector.shape_cast %58 : vector<1x4x4xbf16> to vector<4x4xbf16>
    %cst_12 = arith.constant dense<0.000000e+00> : vector<4x256xf32>
    %60 = tpu.matmul %59, %57, %cst_12 {dimension_numbers = #tpu.dot_dimension_numbers<[1], [0], [0], [1], [0, 0, 1, 1], [], []>} : vector<4x4xbf16>, vector<4x256xbf16>, vector<4x256xf32> -> vector<4x256xf32>
    %61 = arith.addf %52, %60 : vector<4x256xf32>
    %c240_i32 = arith.constant 240 : i32
    %62 = tpu.dynamic_rotate %1 by %c240_i32 dim 1 : vector<4x256xf32>, i32 -> vector<4x256xf32>
    %63 = vector.extract_strided_slice %3 {offsets = [7, 0], sizes = [1, 256], strides = [1, 1]} : vector<9x256xf32> to vector<1x256xf32>
    %64 = vector.broadcast %63 : vector<1x256xf32> to vector<4x256xf32>
    %65 = arith.mulf %62, %64 : vector<4x256xf32>
    %66 = arith.truncf %65 : vector<4x256xf32> to vector<4x256xbf16>
    %67 = vector.extract_strided_slice %2 {offsets = [7, 0, 0], sizes = [1, 4, 4], strides = [1, 1, 1]} : vector<9x4x4xbf16> to vector<1x4x4xbf16>
    %68 = vector.shape_cast %67 : vector<1x4x4xbf16> to vector<4x4xbf16>
    %cst_13 = arith.constant dense<0.000000e+00> : vector<4x256xf32>
    %69 = tpu.matmul %68, %66, %cst_13 {dimension_numbers = #tpu.dot_dimension_numbers<[1], [0], [0], [1], [0, 0, 1, 1], [], []>} : vector<4x4xbf16>, vector<4x256xbf16>, vector<4x256xf32> -> vector<4x256xf32>
    %70 = arith.addf %61, %69 : vector<4x256xf32>
    %c239_i32 = arith.constant 239 : i32
    %71 = tpu.dynamic_rotate %1 by %c239_i32 dim 1 : vector<4x256xf32>, i32 -> vector<4x256xf32>
    %72 = vector.extract_strided_slice %3 {offsets = [8, 0], sizes = [1, 256], strides = [1, 1]} : vector<9x256xf32> to vector<1x256xf32>
    %73 = vector.broadcast %72 : vector<1x256xf32> to vector<4x256xf32>
    %74 = arith.mulf %71, %73 : vector<4x256xf32>
    %75 = arith.truncf %74 : vector<4x256xf32> to vector<4x256xbf16>
    %76 = vector.extract_strided_slice %2 {offsets = [8, 0, 0], sizes = [1, 4, 4], strides = [1, 1, 1]} : vector<9x4x4xbf16> to vector<1x4x4xbf16>
    %77 = vector.shape_cast %76 : vector<1x4x4xbf16> to vector<4x4xbf16>
    %cst_14 = arith.constant dense<0.000000e+00> : vector<4x256xf32>
    %78 = tpu.matmul %77, %75, %cst_14 {dimension_numbers = #tpu.dot_dimension_numbers<[1], [0], [0], [1], [0, 0, 1, 1], [], []>} : vector<4x4xbf16>, vector<4x256xbf16>, vector<4x256xf32> -> vector<4x256xf32>
    %79 = arith.addf %70, %78 : vector<4x256xf32>
    %c0_15 = arith.constant 0 : index
    %c0_16 = arith.constant 0 : index
    %80 = vector.load %arg4[%c0_15, %c0_16] : memref<4x1xf32, #tpu.memory_space<vmem>>, vector<4x1xf32>
    %81 = vector.broadcast %80 : vector<4x1xf32> to vector<4x256xf32>
    %82 = arith.addf %79, %81 : vector<4x256xf32>
    %c0_17 = arith.constant 0 : index
    %c0_18 = arith.constant 0 : index
    %c0_19 = arith.constant 0 : index
    %83 = vector.load %arg5[%c0_17, %c0_18, %c0_19] : memref<1x4x256xf32, #tpu.memory_space<vmem>>, vector<1x4x256xf32>
    %84 = vector.shape_cast %83 : vector<1x4x256xf32> to vector<4x256xf32>
    %85 = vector.shape_cast %82 : vector<4x256xf32> to vector<1x4x256xf32>
    tpu.vector_store %arg5[%c0_17, %c0_18, %c0_19], %85 {strides = array<i32>} : memref<1x4x256xf32, #tpu.memory_space<vmem>>, vector<1x4x256xf32>,
    %cst_20 = arith.constant dense<0.000000e+00> : vector<4xf32>
    %86 = vector.multi_reduction <add>, %82, %cst_20 [1] : vector<4x256xf32> to vector<4xf32>
    %87 = vector.shape_cast %86 : vector<4xf32> to vector<4x1xf32>
    %c0_21 = arith.constant 0 : index
    %c0_22 = arith.constant 0 : index
    %c0_23 = arith.constant 0 : index
    %88 = vector.load %arg6[%c0_21, %c0_22, %c0_23] : memref<1x4x1xf32, #tpu.memory_space<vmem>>, vector<1x4x1xf32>
    %89 = vector.shape_cast %88 : vector<1x4x1xf32> to vector<4x1xf32>
    %90 = vector.shape_cast %87 : vector<4x1xf32> to vector<1x4x1xf32>
    tpu.vector_store %arg6[%c0_21, %c0_22, %c0_23], %90 {strides = array<i32>} : memref<1x4x1xf32, #tpu.memory_space<vmem>>, vector<1x4x1xf32>,
    %91 = arith.mulf %82, %82 : vector<4x256xf32>
    %cst_24 = arith.constant dense<0.000000e+00> : vector<4xf32>
    %92 = vector.multi_reduction <add>, %91, %cst_24 [1] : vector<4x256xf32> to vector<4xf32>
    %93 = vector.shape_cast %92 : vector<4xf32> to vector<4x1xf32>
    %c0_25 = arith.constant 0 : index
    %c0_26 = arith.constant 0 : index
    %c0_27 = arith.constant 0 : index
    %94 = vector.load %arg7[%c0_25, %c0_26, %c0_27] : memref<1x4x1xf32, #tpu.memory_space<vmem>>, vector<1x4x1xf32>
    %95 = vector.shape_cast %94 : vector<1x4x1xf32> to vector<4x1xf32>
    %96 = vector.shape_cast %93 : vector<4x1xf32> to vector<1x4x1xf32>
    tpu.vector_store %arg7[%c0_25, %c0_26, %c0_27], %96 {strides = array<i32>} : memref<1x4x1xf32, #tpu.memory_space<vmem>>, vector<1x4x1xf32>,
    return
  }
  func.func @transform_0(%arg0: i32) -> (i32, i32, i32) {
    %c0_i32 = arith.constant 0 : i32
    %c0_i32_0 = arith.constant 0 : i32
    %c0_i32_1 = arith.constant 0 : i32
    return %arg0, %c0_i32, %c0_i32_0 : i32, i32, i32
  }
  func.func @transform_1(%arg0: i32) -> (i32, i32, i32) {
    %c0_i32 = arith.constant 0 : i32
    %c0_i32_0 = arith.constant 0 : i32
    %c0_i32_1 = arith.constant 0 : i32
    %c0_i32_2 = arith.constant 0 : i32
    return %c0_i32, %c0_i32_0, %c0_i32_1 : i32, i32, i32
  }
  func.func @transform_2(%arg0: i32) -> (i32, i32) {
    %c0_i32 = arith.constant 0 : i32
    %c0_i32_0 = arith.constant 0 : i32
    %c0_i32_1 = arith.constant 0 : i32
    return %c0_i32, %c0_i32_0 : i32, i32
  }
  func.func @transform_3(%arg0: i32) -> (i32, i32) {
    %c0_i32 = arith.constant 0 : i32
    %c0_i32_0 = arith.constant 0 : i32
    %c0_i32_1 = arith.constant 0 : i32
    return %c0_i32, %c0_i32_0 : i32, i32
  }
  func.func @transform_4(%arg0: i32) -> (i32, i32, i32) {
    %c0_i32 = arith.constant 0 : i32
    %c0_i32_0 = arith.constant 0 : i32
    %c0_i32_1 = arith.constant 0 : i32
    return %arg0, %c0_i32, %c0_i32_0 : i32, i32, i32
  }
  func.func @transform_5(%arg0: i32) -> (i32, i32, i32) {
    %c0_i32 = arith.constant 0 : i32
    %c0_i32_0 = arith.constant 0 : i32
    %c0_i32_1 = arith.constant 0 : i32
    return %arg0, %c0_i32, %c0_i32_0 : i32, i32, i32
  }
  func.func @transform_6(%arg0: i32) -> (i32, i32, i32) {
    %c0_i32 = arith.constant 0 : i32
    %c0_i32_0 = arith.constant 0 : i32
    %c0_i32_1 = arith.constant 0 : i32
    return %arg0, %c0_i32, %c0_i32_0 : i32, i32, i32
  }
}

module attributes {stable_mosaic.version = 11 : i64} {
  func.func @_bn_relu_kernel(%arg0: i32, %arg1: memref<1x4x256xf32, #tpu.memory_space<vmem>>, %arg2: memref<4x1xf32, #tpu.memory_space<vmem>>, %arg3: memref<4x1xf32, #tpu.memory_space<vmem>>, %arg4: memref<4x1xf32, #tpu.memory_space<vmem>>, %arg5: memref<4x1xf32, #tpu.memory_space<vmem>>, %arg6: memref<1x4x256xf32, #tpu.memory_space<vmem>>) attributes {dimension_semantics = [#tpu.dimension_semantics<parallel>], iteration_bounds = array<i64: 2>, scalar_prefetch = 0 : i64, scratch_operands = 0 : i64, tpu.core_type = #tpu.core_type<tc>, window_params = [{transform_indices = @transform_0, window_bounds = array<i64: 1, 4, 256>}, {pipeline_mode = #tpu.pipeline_mode<synchronous>, transform_indices = @transform_1, window_bounds = array<i64: 4, 1>}, {pipeline_mode = #tpu.pipeline_mode<synchronous>, transform_indices = @transform_2, window_bounds = array<i64: 4, 1>}, {pipeline_mode = #tpu.pipeline_mode<synchronous>, transform_indices = @transform_3, window_bounds = array<i64: 4, 1>}, {pipeline_mode = #tpu.pipeline_mode<synchronous>, transform_indices = @transform_4, window_bounds = array<i64: 4, 1>}, {transform_indices = @transform_5, window_bounds = array<i64: 1, 4, 256>}]} {
    %c0 = arith.constant 0 : index
    %c0_0 = arith.constant 0 : index
    %0 = vector.load %arg2[%c0, %c0_0] : memref<4x1xf32, #tpu.memory_space<vmem>>, vector<4x1xf32>
    %cst = arith.constant 0.001953125 : f32
    %1 = vector.broadcast %cst : f32 to vector<4x1xf32>
    %2 = arith.mulf %0, %1 : vector<4x1xf32>
    %c0_1 = arith.constant 0 : index
    %c0_2 = arith.constant 0 : index
    %3 = vector.load %arg3[%c0_1, %c0_2] : memref<4x1xf32, #tpu.memory_space<vmem>>, vector<4x1xf32>
    %cst_3 = arith.constant 0.001953125 : f32
    %4 = vector.broadcast %cst_3 : f32 to vector<4x1xf32>
    %5 = arith.mulf %3, %4 : vector<4x1xf32>
    %6 = arith.mulf %2, %2 : vector<4x1xf32>
    %7 = arith.subf %5, %6 : vector<4x1xf32>
    %c0_4 = arith.constant 0 : index
    %c0_5 = arith.constant 0 : index
    %8 = vector.load %arg4[%c0_4, %c0_5] : memref<4x1xf32, #tpu.memory_space<vmem>>, vector<4x1xf32>
    %cst_6 = arith.constant 9.99999974E-6 : f32
    %9 = vector.broadcast %cst_6 : f32 to vector<4x1xf32>
    %10 = arith.addf %7, %9 : vector<4x1xf32>
    %11 = math.rsqrt %10 : vector<4x1xf32>
    %12 = arith.mulf %8, %11 : vector<4x1xf32>
    %c0_7 = arith.constant 0 : index
    %c0_8 = arith.constant 0 : index
    %13 = vector.load %arg5[%c0_7, %c0_8] : memref<4x1xf32, #tpu.memory_space<vmem>>, vector<4x1xf32>
    %14 = arith.mulf %2, %12 : vector<4x1xf32>
    %15 = arith.subf %13, %14 : vector<4x1xf32>
    %c0_9 = arith.constant 0 : index
    %c0_10 = arith.constant 0 : index
    %c0_11 = arith.constant 0 : index
    %16 = vector.load %arg1[%c0_9, %c0_10, %c0_11] : memref<1x4x256xf32, #tpu.memory_space<vmem>>, vector<1x4x256xf32>
    %17 = vector.shape_cast %16 : vector<1x4x256xf32> to vector<4x256xf32>
    %18 = vector.broadcast %12 : vector<4x1xf32> to vector<4x256xf32>
    %19 = arith.mulf %17, %18 : vector<4x256xf32>
    %20 = vector.broadcast %15 : vector<4x1xf32> to vector<4x256xf32>
    %21 = arith.addf %19, %20 : vector<4x256xf32>
    %cst_12 = arith.constant 0.000000e+00 : f32
    %22 = vector.broadcast %cst_12 : f32 to vector<4x256xf32>
    %23 = arith.maximumf %21, %22 : vector<4x256xf32>
    %c0_13 = arith.constant 0 : index
    %c0_14 = arith.constant 0 : index
    %c0_15 = arith.constant 0 : index
    %24 = vector.load %arg6[%c0_13, %c0_14, %c0_15] : memref<1x4x256xf32, #tpu.memory_space<vmem>>, vector<1x4x256xf32>
    %25 = vector.shape_cast %24 : vector<1x4x256xf32> to vector<4x256xf32>
    %26 = vector.shape_cast %23 : vector<4x256xf32> to vector<1x4x256xf32>
    tpu.vector_store %arg6[%c0_13, %c0_14, %c0_15], %26 {strides = array<i32>} : memref<1x4x256xf32, #tpu.memory_space<vmem>>, vector<1x4x256xf32>,
    return
  }
  func.func @transform_0(%arg0: i32) -> (i32, i32, i32) {
    %c0_i32 = arith.constant 0 : i32
    %c0_i32_0 = arith.constant 0 : i32
    %c0_i32_1 = arith.constant 0 : i32
    return %arg0, %c0_i32, %c0_i32_0 : i32, i32, i32
  }
  func.func @transform_1(%arg0: i32) -> (i32, i32) {
    %c0_i32 = arith.constant 0 : i32
    %c0_i32_0 = arith.constant 0 : i32
    %c0_i32_1 = arith.constant 0 : i32
    return %c0_i32, %c0_i32_0 : i32, i32
  }
  func.func @transform_2(%arg0: i32) -> (i32, i32) {
    %c0_i32 = arith.constant 0 : i32
    %c0_i32_0 = arith.constant 0 : i32
    %c0_i32_1 = arith.constant 0 : i32
    return %c0_i32, %c0_i32_0 : i32, i32
  }
  func.func @transform_3(%arg0: i32) -> (i32, i32) {
    %c0_i32 = arith.constant 0 : i32
    %c0_i32_0 = arith.constant 0 : i32
    %c0_i32_1 = arith.constant 0 : i32
    return %c0_i32, %c0_i32_0 : i32, i32
  }
  func.func @transform_4(%arg0: i32) -> (i32, i32) {
    %c0_i32 = arith.constant 0 : i32
    %c0_i32_0 = arith.constant 0 : i32
    %c0_i32_1 = arith.constant 0 : i32
    return %c0_i32, %c0_i32_0 : i32, i32
  }
  func.func @transform_5(%arg0: i32) -> (i32, i32, i32) {
    %c0_i32 = arith.constant 0 : i32
    %c0_i32_0 = arith.constant 0 : i32
    %c0_i32_1 = arith.constant 0 : i32
    return %arg0, %c0_i32, %c0_i32_0 : i32, i32, i32
  }
}

</mosaic_0001>

<llo_original>
// kernel: single_conv.3
$region0: #{single_conv.3}
  #allocation0 [shape = 'u32[]', space=smem, size = 0x4, offset = 0x4, fixed_abs, tag = 'smem constant byte address 0x4 - core index']
  #allocation1 [shape = 'u32[144,128]{1,0:T(1,128)}', space=vmem, size = 0x12000, scoped, tag = 'internal scratch']
  %s0 = inlined_call_operand.vmem [shape: f32[2,4,256], index: 0, kind: input, shape index: {}, may-alias: {0,5}]
  %s1 = inlined_call_operand.vmem [shape: f32[4,1], index: 1, kind: input, shape index: {}]
  %s2 = inlined_call_operand.vmem [shape: f32[4,1], index: 2, kind: input, shape index: {}]
  %s3 = inlined_call_operand.vmem [shape: f32[4,1], index: 3, kind: input, shape index: {}]
  %s4 = inlined_call_operand.vmem [shape: f32[4,1], index: 4, kind: input, shape index: {}]
  %s5 = inlined_call_operand.vmem [shape: f32[2,4,256], index: 5, kind: output, shape index: {}, may-alias: {0,5}]
  %s6 = sld [smem:[#allocation0]]
  $region53: #{single_conv.3} parent=0
    _
  %s8 = ssub.s32 1, %s6
  %s9 = scalar_select 0, %s8, %s6
  loop: start=0, step=1, limit=4
  $region2: #{single_conv.3} parent=0 // loop_pre_header
    _
  $region3: #{single_conv.3} parent=0 // loop_header
    %s11 = sphi 0, %s15
    %p12 = scmp.ge.s32.totalorder %s11, 4
    %s21 = sphi 0, %s23
    %s24 = sphi 0, %s21
    %s25 = sphi 0, %s24
    %s41 = sphi 0, %s25
    %s45 = sphi 0, %s45
    %s47 = sphi 0, %s45
    %s48 = sphi 0, %s47
    %s62 = sphi 0, %s48
    %s66 = sphi 0, %s66
    %s68 = sphi 0, %s66
    %s69 = sphi 0, %s68
    %s83 = sphi 0, %s69
    %s87 = sphi 0, %s87
    %s89 = sphi 0, %s87
    %s90 = sphi 0, %s89
    %s104 = sphi 0, %s90
    %s108 = sphi 0, %s108
    %s110 = sphi 0, %s108
    %s111 = sphi 0, %s110
    %s125 = sphi 0, %s111
    %s131 = sphi 0, %s133
    %s134 = sphi 0, %s131
    %s135 = sphi 0, %s134
    %s151 = sphi 0, %s135
  $region4: #{single_conv.3} parent=0 // loop_header_branch
    %14 = sbr.rel (%p12) target = $region8
  $region5: #{single_conv.3} parent=0 // loop_body
    %s16 = ssub.s32 %s11, 1
    %s17 = ssub.s32 %s11, 2
    %s18 = sadd.s32 %s11, 1
    %s19 = ssub.s32 %s11, %s18
    %p20 = scmp.eq.s32.totalorder %s19, 0
    %s22 = sadd.s32 %s21, 1
    %s23 = scalar_select %p20, %s21, %s22
    %p26 = pneg %p20
    %p27 = scmp.eq.s32.totalorder %s11, 1
    %p28 = por %p26, %p27
    %p29 = scmp.ne.s32.totalorder %s21, %s24
    %p30 = scmp.eq.s32.totalorder %s11, 0
    %p31 = por %p29, %p30
    %p32 = scmp.ne.s32.totalorder %s21, %s24
    %p33 = scmp.eq.s32.totalorder %s16, 1
    %p34 = por %p32, %p33
    %p35 = scmp.ne.s32.totalorder %s24, %s25
    %p36 = scmp.eq.s32.totalorder %s16, 0
    %p37 = por %p35, %p36
    %p38 = scmp.ne.s32.totalorder %s24, %s25
    %p39 = scmp.eq.s32.totalorder %s17, 1
    %p40 = por %p38, %p39
    %p42 = scmp.ne.s32.totalorder %s25, %s41
    %p43 = scmp.eq.s32.totalorder %s17, 0
    %p44 = por %p42, %p43
    %s46 = sadd.s32 %s45, 1
    %p49 = scmp.eq.s32.totalorder %s11, 1
    %p50 = scmp.ne.s32.totalorder %s45, %s47
    %p51 = scmp.eq.s32.totalorder %s11, 0
    %p52 = por %p50, %p51
    %p53 = scmp.ne.s32.totalorder %s45, %s47
    %p54 = scmp.eq.s32.totalorder %s16, 1
    %p55 = por %p53, %p54
    %p56 = scmp.ne.s32.totalorder %s47, %s48
    %p57 = scmp.eq.s32.totalorder %s16, 0
    %p58 = por %p56, %p57
    %p59 = scmp.ne.s32.totalorder %s47, %s48
    %p60 = scmp.eq.s32.totalorder %s17, 1
    %p61 = por %p59, %p60
    %p63 = scmp.ne.s32.totalorder %s48, %s62
    %p64 = scmp.eq.s32.totalorder %s17, 0
    %p65 = por %p63, %p64
    %s67 = sadd.s32 %s66, 1
    %p70 = scmp.eq.s32.totalorder %s11, 1
    %p71 = scmp.ne.s32.totalorder %s66, %s68
    %p72 = scmp.eq.s32.totalorder %s11, 0
    %p73 = por %p71, %p72
    %p74 = scmp.ne.s32.totalorder %s66, %s68
    %p75 = scmp.eq.s32.totalorder %s16, 1
    %p76 = por %p74, %p75
    %p77 = scmp.ne.s32.totalorder %s68, %s69
    %p78 = scmp.eq.s32.totalorder %s16, 0
    %p79 = por %p77, %p78
    %p80 = scmp.ne.s32.totalorder %s68, %s69
    %p81 = scmp.eq.s32.totalorder %s17, 1
    %p82 = por %p80, %p81
    %p84 = scmp.ne.s32.totalorder %s69, %s83
    %p85 = scmp.eq.s32.totalorder %s17, 0
    %p86 = por %p84, %p85
    %s88 = sadd.s32 %s87, 1
    %p91 = scmp.eq.s32.totalorder %s11, 1
    %p92 = scmp.ne.s32.totalorder %s87, %s89
    %p93 = scmp.eq.s32.totalorder %s11, 0
    %p94 = por %p92, %p93
    %p95 = scmp.ne.s32.totalorder %s87, %s89
    %p96 = scmp.eq.s32.totalorder %s16, 1
    %p97 = por %p95, %p96
    %p98 = scmp.ne.s32.totalorder %s89, %s90
    %p99 = scmp.eq.s32.totalorder %s16, 0
    %p100 = por %p98, %p99
    %p101 = scmp.ne.s32.totalorder %s89, %s90
    %p102 = scmp.eq.s32.totalorder %s17, 1
    %p103 = por %p101, %p102
    %p105 = scmp.ne.s32.totalorder %s90, %s104
    %p106 = scmp.eq.s32.totalorder %s17, 0
    %p107 = por %p105, %p106
    %s109 = sadd.s32 %s108, 1
    %p112 = scmp.eq.s32.totalorder %s11, 1
    %p113 = scmp.ne.s32.totalorder %s108, %s110
    %p114 = scmp.eq.s32.totalorder %s11, 0
    %p115 = por %p113, %p114
    %p116 = scmp.ne.s32.totalorder %s108, %s110
    %p117 = scmp.eq.s32.totalorder %s16, 1
    %p118 = por %p116, %p117
    %p119 = scmp.ne.s32.totalorder %s110, %s111
    %p120 = scmp.eq.s32.totalorder %s16, 0
    %p121 = por %p119, %p120
    %p122 = scmp.ne.s32.totalorder %s110, %s111
    %p123 = scmp.eq.s32.totalorder %s17, 1
    %p124 = por %p122, %p123
    %p126 = scmp.ne.s32.totalorder %s111, %s125
    %p127 = scmp.eq.s32.totalorder %s17, 0
    %p128 = por %p126, %p127
    %s129 = ssub.s32 %s11, %s18
    %p130 = scmp.eq.s32.totalorder %s129, 0
    %s132 = sadd.s32 %s131, 1
    %s133 = scalar_select %p130, %s131, %s132
    %p136 = pneg %p130
    %p137 = scmp.eq.s32.totalorder %s11, 1
    %p138 = por %p136, %p137
    %p139 = scmp.ne.s32.totalorder %s131, %s134
    %p140 = scmp.eq.s32.totalorder %s11, 0
    %p141 = por %p139, %p140
    %p142 = scmp.ne.s32.totalorder %s131, %s134
    %p143 = scmp.eq.s32.totalorder %s16, 1
    %p144 = por %p142, %p143
    %p145 = scmp.ne.s32.totalorder %s134, %s135
    %p146 = scmp.eq.s32.totalorder %s16, 0
    %p147 = por %p145, %p146
    %p148 = scmp.ne.s32.totalorder %s134, %s135
    %p149 = scmp.eq.s32.totalorder %s17, 1
    %p150 = por %p148, %p149
    %p152 = scmp.ne.s32.totalorder %s135, %s151
    %p153 = scmp.eq.s32.totalorder %s17, 0
    %p154 = por %p152, %p153
    %p155 = scmp.le.s32.totalorder 1, %s11
    %p156 = scmp.lt.s32.totalorder %s11, 3
    %p157 = pnand %p155, %p156
    %p158 = pneg %p157
    // Predicated region
    $region9: #{single_conv.3} parent=5 // pred_check
      _
    $region10: #{single_conv.3} parent=5 // pred_check_branch
      %160 = sbr.rel (%p157) target = $region12
    $region11: #{single_conv.3} parent=5 // pred_region
      %s161 = ssub.s32 %s11, 1
      // Predicated region
      $region13: #{single_conv.3} parent=11 // pred_check
        %p162 = pneg %p58
      $region14: #{single_conv.3} parent=11 // pred_check_branch
        %164 = sbr.rel (%p162) target = $region16
      $region15: #{single_conv.3} parent=11 // pred_region
        _
      $region16: #{single_conv.3} parent=11 // pred_fallthru
        _
      // Predicated region
      $region17: #{single_conv.3} parent=11 // pred_check
        %p165 = pneg %p79
      $region18: #{single_conv.3} parent=11 // pred_check_branch
        %167 = sbr.rel (%p165) target = $region20
      $region19: #{single_conv.3} parent=11 // pred_region
        _
      $region20: #{single_conv.3} parent=11 // pred_fallthru
        _
      // Predicated region
      $region21: #{single_conv.3} parent=11 // pred_check
        %p168 = pneg %p100
      $region22: #{single_conv.3} parent=11 // pred_check_branch
        %170 = sbr.rel (%p168) target = $region24
      $region23: #{single_conv.3} parent=11 // pred_region
        _
      $region24: #{single_conv.3} parent=11 // pred_fallthru
        _
      // Predicated region
      $region25: #{single_conv.3} parent=11 // pred_check
        %p171 = pneg %p121
      $region26: #{single_conv.3} parent=11 // pred_check_branch
        %173 = sbr.rel (%p171) target = $region28
      $region27: #{single_conv.3} parent=11 // pred_region
        _
      $region28: #{single_conv.3} parent=11 // pred_fallthru
        _
    $region12: #{single_conv.3} parent=5 // pred_fallthru
      _
    %p174 = scmp.lt.s32.totalorder %s11, 2
    // Predicated region
    $region29: #{single_conv.3} parent=5 // pred_check
      %p175 = pneg %p174
    $region30: #{single_conv.3} parent=5 // pred_check_branch
      %177 = sbr.rel (%p175) target = $region32
    $region31: #{single_conv.3} parent=5 // pred_region
      // Predicated region
      $region33: #{single_conv.3} parent=31 // pred_check
        %p178 = pneg %p31
      $region34: #{single_conv.3} parent=31 // pred_check_branch
        %180 = sbr.rel (%p178) target = $region36
      $region35: #{single_conv.3} parent=31 // pred_region
        %p181 = scmp.lt.s32.totalorder %s11, 1
        %s182 = scalar_select %p181, %s11, 1
        %s183 = smul.addr %s182, 2
        %s184 = smul.addr %s183, 4
        %s185 = scalar_lea.vmem %s0, %s184
      $region36: #{single_conv.3} parent=31 // pred_fallthru
        _
    $region32: #{single_conv.3} parent=5 // pred_fallthru
      _
    %p186 = scmp.le.s32.totalorder 1, %s11
    %p187 = scmp.lt.s32.totalorder %s11, 3
    %p188 = pnand %p186, %p187
    %p189 = pneg %p188
    // Predicated region
    $region37: #{single_conv.3} parent=5 // pred_check
      _
    $region38: #{single_conv.3} parent=5 // pred_check_branch
      %191 = sbr.rel (%p188) target = $region40
    $region39: #{single_conv.3} parent=5 // pred_region
      %s192 = ssub.s32 %s11, 1
      %p193 = scmp.lt.s32.totalorder %s16, 1
      %s194 = scalar_select %p193, %s16, 1
      %s195 = smul.addr %s194, 2
      %s196 = smul.addr %s195, 4
      %s197 = scalar_lea.vmem %s0, %s196
      %p198 = pneg %p37
      %p199 = pneg %p34
      %p200 = pneg %p58
      %p201 = pneg %p55
      %p202 = pneg %p79
      %p203 = pneg %p76
      %p204 = pneg %p100
      %p205 = pneg %p97
      %p206 = pneg %p121
      %p207 = pneg %p118
      %p208 = pneg %p147
      %p209 = pneg %p144
      %p210 = scmp.lt.s32.totalorder %s16, 1
      %s211 = scalar_select %p210, %s16, 1
      %s212 = smul.addr %s211, 2
      %s213 = smul.addr %s212, 4
      %s214 = scalar_lea.vmem %s5, %s213
      %p215 = scmp.lt.s32.totalorder %s16, 1
      %s216 = scalar_select %p215, %s16, 1
      %s217 = smul.addr %s216, 2
      %s218 = smul.addr %s217, 4
      %s219 = scalar_lea.vmem %s0, %s218
      %p220 = scmp.lt.s32.totalorder %s16, 1
      %s221 = scalar_select %p220, %s16, 1
      %s222 = smul.addr %s221, 2
      %s223 = smul.addr %s222, 4
      %s224 = scalar_lea.vmem %s5, %s223
      %v225 = vld [vmem:[%s1] sm:$0xf]
      %v226 = vmul.f32 %v225, 0.001953125
      %v227 = vld [vmem:[%s2] sm:$0xf]
      %v228 = vmul.f32 %v227, 0.001953125
      %v229 = vmul.f32 %v226, %v226
      %v230 = vsub.f32 %v228, %v229
      %v231 = vld [vmem:[%s3] sm:$0xf]
      %v232 = vadd.f32 %v230, 1e-05
      %v233 = vrsqrt.pop %v232
      %v234 = vmul.f32 %v231, %v233
      %v235 = vld [vmem:[%s4] sm:$0xf]
      %v236 = vmul.f32 %v226, %v234
      %v237 = vsub.f32 %v235, %v236
      %v238 = vld [vmem:[%s219] sm:$0xff]
      %240 = vset.pattern.permute.xlu0 0
      %241 = vperm.xlu0 %240, %v234
      %v242 = vpop.permute.xlu0 %241
      %v244 = vunpack.c.l.s4 839922192
      %v245 = vunpack.c.0.s8 %v244
      %v246 = vlaneseq
      %v247 = vshrl.u32 %v246, 7
      %v248 = vsub.s32 %v245, %v247
      %v249 = vrot.slane %v242, %v248
      %v251 = vmul.f32 %v238, %v249
      %253 = vset.pattern.permute.xlu0 0
      %254 = vperm.xlu0 %253, %v237
      %v255 = vpop.permute.xlu0 %254
      %v257 = vunpack.c.l.s4 839922192
      %v258 = vunpack.c.0.s8 %v257
      %v259 = vlaneseq
      %v260 = vshrl.u32 %v259, 7
      %v261 = vsub.s32 %v258, %v260
      %v262 = vrot.slane %v255, %v261
      %v264 = vadd.f32 %v251, %v262
      %v265 = vmax.f32 %v264, 0.0
      %266 = vst [vmem:[%s224] sm:$0xff] %v265
      %p267 = scmp.lt.s32.totalorder %s16, 1
      %s268 = scalar_select %p267, %s16, 1
      %s269 = smul.addr %s268, 2
      %s270 = smul.addr %s269, 4
      %s271 = scalar_lea.vmem %s5, %s270
      // Predicated region
      $region41: #{single_conv.3} parent=39 // pred_check
        %p272 = pneg %p144
      $region42: #{single_conv.3} parent=39 // pred_check_branch
        %274 = sbr.rel (%p272) target = $region44
      $region43: #{single_conv.3} parent=39 // pred_region
        _
      $region44: #{single_conv.3} parent=39 // pred_fallthru
        _
    $region40: #{single_conv.3} parent=5 // pred_fallthru
      _
    %p275 = scmp.le.s32.totalorder 2, %s11
    // Predicated region
    $region45: #{single_conv.3} parent=5 // pred_check
      %p276 = pneg %p275
    $region46: #{single_conv.3} parent=5 // pred_check_branch
      %278 = sbr.rel (%p276) target = $region48
    $region47: #{single_conv.3} parent=5 // pred_region
      %s279 = ssub.s32 %s11, 2
      // Predicated region
      $region49: #{single_conv.3} parent=47 // pred_check
        %p280 = pneg %p150
      $region50: #{single_conv.3} parent=47 // pred_check_branch
        %282 = sbr.rel (%p280) target = $region52
      $region51: #{single_conv.3} parent=47 // pred_region
        %p283 = scmp.lt.s32.totalorder %s17, 1
        %s284 = scalar_select %p283, %s17, 1
        %s285 = smul.addr %s284, 2
        %s286 = smul.addr %s285, 4
        %s287 = scalar_lea.vmem %s5, %s286
      $region52: #{single_conv.3} parent=47 // pred_fallthru
        _
    $region48: #{single_conv.3} parent=5 // pred_fallthru
      _
  $region6: #{single_conv.3} parent=0 // loop_footer
    %s15 = sadd.s32 1, %s11
  $region7: #{single_conv.3} parent=0 // loop_footer_branch
    %10 = sbr.rel target = $region3
  $region8: #{single_conv.3} parent=0 // loop_exit
    _

// kernel: single_conv.2
$region0: #{single_conv.2}
  #allocation0 [shape = 'u32[]', space=smem, size = 0x4, offset = 0x4, fixed_abs, tag = 'smem constant byte address 0x4 - core index']
  #allocation1 [shape = 'u32[144,128]{1,0:T(1,128)}', space=vmem, size = 0x12000, scoped, tag = 'internal scratch']
  %s0 = inlined_call_operand.vmem [shape: f32[2,4,256], index: 0, kind: input, shape index: {}]
  %s1 = inlined_call_operand.vmem [shape: bf16[9,4,4], index: 1, kind: input, shape index: {}]
  %s2 = inlined_call_operand.vmem [shape: f32[9,256], index: 2, kind: input, shape index: {}]
  %s3 = inlined_call_operand.vmem [shape: f32[4,1], index: 3, kind: input, shape index: {}]
  %s4 = inlined_call_operand.vmem [shape: f32[2,4,256], index: 4, kind: output, shape index: {0}]
  %s5 = inlined_call_operand.vmem [shape: f32[2,4,1], index: 5, kind: output, shape index: {1}]
  %s6 = inlined_call_operand.vmem [shape: f32[2,4,1], index: 6, kind: output, shape index: {2}]
  %7 = xla_tuple %s4, %s5, %s6
  %s8 = sld [smem:[#allocation0]]
  $region65: #{single_conv.2} parent=0
    _
  %s10 = ssub.s32 1, %s8
  %s11 = scalar_select 0, %s10, %s8
  loop: start=0, step=1, limit=4
  $region2: #{single_conv.2} parent=0 // loop_pre_header
    _
  $region3: #{single_conv.2} parent=0 // loop_header
    %s13 = sphi 0, %s17
    %p14 = scmp.ge.s32.totalorder %s13, 4
    %s23 = sphi 0, %s25
    %s26 = sphi 0, %s23
    %s27 = sphi 0, %s26
    %s43 = sphi 0, %s27
    %s47 = sphi 0, %s47
    %s49 = sphi 0, %s47
    %s50 = sphi 0, %s49
    %s64 = sphi 0, %s50
    %s68 = sphi 0, %s68
    %s70 = sphi 0, %s68
    %s71 = sphi 0, %s70
    %s85 = sphi 0, %s71
    %s89 = sphi 0, %s89
    %s91 = sphi 0, %s89
    %s92 = sphi 0, %s91
    %s106 = sphi 0, %s92
    %s112 = sphi 0, %s114
    %s115 = sphi 0, %s112
    %s116 = sphi 0, %s115
    %s132 = sphi 0, %s116
    %s138 = sphi 0, %s140
    %s141 = sphi 0, %s138
    %s142 = sphi 0, %s141
    %s158 = sphi 0, %s142
    %s164 = sphi 0, %s166
    %s167 = sphi 0, %s164
    %s168 = sphi 0, %s167
    %s184 = sphi 0, %s168
  $region4: #{single_conv.2} parent=0 // loop_header_branch
    %16 = sbr.rel (%p14) target = $region8
  $region5: #{single_conv.2} parent=0 // loop_body
    %s18 = ssub.s32 %s13, 1
    %s19 = ssub.s32 %s13, 2
    %s20 = sadd.s32 %s13, 1
    %s21 = ssub.s32 %s13, %s20
    %p22 = scmp.eq.s32.totalorder %s21, 0
    %s24 = sadd.s32 %s23, 1
    %s25 = scalar_select %p22, %s23, %s24
    %p28 = pneg %p22
    %p29 = scmp.eq.s32.totalorder %s13, 1
    %p30 = por %p28, %p29
    %p31 = scmp.ne.s32.totalorder %s23, %s26
    %p32 = scmp.eq.s32.totalorder %s13, 0
    %p33 = por %p31, %p32
    %p34 = scmp.ne.s32.totalorder %s23, %s26
    %p35 = scmp.eq.s32.totalorder %s18, 1
    %p36 = por %p34, %p35
    %p37 = scmp.ne.s32.totalorder %s26, %s27
    %p38 = scmp.eq.s32.totalorder %s18, 0
    %p39 = por %p37, %p38
    %p40 = scmp.ne.s32.totalorder %s26, %s27
    %p41 = scmp.eq.s32.totalorder %s19, 1
    %p42 = por %p40, %p41
    %p44 = scmp.ne.s32.totalorder %s27, %s43
    %p45 = scmp.eq.s32.totalorder %s19, 0
    %p46 = por %p44, %p45
    %s48 = sadd.s32 %s47, 1
    %p51 = scmp.eq.s32.totalorder %s13, 1
    %p52 = scmp.ne.s32.totalorder %s47, %s49
    %p53 = scmp.eq.s32.totalorder %s13, 0
    %p54 = por %p52, %p53
    %p55 = scmp.ne.s32.totalorder %s47, %s49
    %p56 = scmp.eq.s32.totalorder %s18, 1
    %p57 = por %p55, %p56
    %p58 = scmp.ne.s32.totalorder %s49, %s50
    %p59 = scmp.eq.s32.totalorder %s18, 0
    %p60 = por %p58, %p59
    %p61 = scmp.ne.s32.totalorder %s49, %s50
    %p62 = scmp.eq.s32.totalorder %s19, 1
    %p63 = por %p61, %p62
    %p65 = scmp.ne.s32.totalorder %s50, %s64
    %p66 = scmp.eq.s32.totalorder %s19, 0
    %p67 = por %p65, %p66
    %s69 = sadd.s32 %s68, 1
    %p72 = scmp.eq.s32.totalorder %s13, 1
    %p73 = scmp.ne.s32.totalorder %s68, %s70
    %p74 = scmp.eq.s32.totalorder %s13, 0
    %p75 = por %p73, %p74
    %p76 = scmp.ne.s32.totalorder %s68, %s70
    %p77 = scmp.eq.s32.totalorder %s18, 1
    %p78 = por %p76, %p77
    %p79 = scmp.ne.s32.totalorder %s70, %s71
    %p80 = scmp.eq.s32.totalorder %s18, 0
    %p81 = por %p79, %p80
    %p82 = scmp.ne.s32.totalorder %s70, %s71
    %p83 = scmp.eq.s32.totalorder %s19, 1
    %p84 = por %p82, %p83
    %p86 = scmp.ne.s32.totalorder %s71, %s85
    %p87 = scmp.eq.s32.totalorder %s19, 0
    %p88 = por %p86, %p87
    %s90 = sadd.s32 %s89, 1
    %p93 = scmp.eq.s32.totalorder %s13, 1
    %p94 = scmp.ne.s32.totalorder %s89, %s91
    %p95 = scmp.eq.s32.totalorder %s13, 0
    %p96 = por %p94, %p95
    %p97 = scmp.ne.s32.totalorder %s89, %s91
    %p98 = scmp.eq.s32.totalorder %s18, 1
    %p99 = por %p97, %p98
    %p100 = scmp.ne.s32.totalorder %s91, %s92
    %p101 = scmp.eq.s32.totalorder %s18, 0
    %p102 = por %p100, %p101
    %p103 = scmp.ne.s32.totalorder %s91, %s92
    %p104 = scmp.eq.s32.totalorder %s19, 1
    %p105 = por %p103, %p104
    %p107 = scmp.ne.s32.totalorder %s92, %s106
    %p108 = scmp.eq.s32.totalorder %s19, 0
    %p109 = por %p107, %p108
    %s110 = ssub.s32 %s13, %s20
    %p111 = scmp.eq.s32.totalorder %s110, 0
    %s113 = sadd.s32 %s112, 1
    %s114 = scalar_select %p111, %s112, %s113
    %p117 = pneg %p111
    %p118 = scmp.eq.s32.totalorder %s13, 1
    %p119 = por %p117, %p118
    %p120 = scmp.ne.s32.totalorder %s112, %s115
    %p121 = scmp.eq.s32.totalorder %s13, 0
    %p122 = por %p120, %p121
    %p123 = scmp.ne.s32.totalorder %s112, %s115
    %p124 = scmp.eq.s32.totalorder %s18, 1
    %p125 = por %p123, %p124
    %p126 = scmp.ne.s32.totalorder %s115, %s116
    %p127 = scmp.eq.s32.totalorder %s18, 0
    %p128 = por %p126, %p127
    %p129 = scmp.ne.s32.totalorder %s115, %s116
    %p130 = scmp.eq.s32.totalorder %s19, 1
    %p131 = por %p129, %p130
    %p133 = scmp.ne.s32.totalorder %s116, %s132
    %p134 = scmp.eq.s32.totalorder %s19, 0
    %p135 = por %p133, %p134
    %s136 = ssub.s32 %s13, %s20
    %p137 = scmp.eq.s32.totalorder %s136, 0
    %s139 = sadd.s32 %s138, 1
    %s140 = scalar_select %p137, %s138, %s139
    %p143 = pneg %p137
    %p144 = scmp.eq.s32.totalorder %s13, 1
    %p145 = por %p143, %p144
    %p146 = scmp.ne.s32.totalorder %s138, %s141
    %p147 = scmp.eq.s32.totalorder %s13, 0
    %p148 = por %p146, %p147
    %p149 = scmp.ne.s32.totalorder %s138, %s141
    %p150 = scmp.eq.s32.totalorder %s18, 1
    %p151 = por %p149, %p150
    %p152 = scmp.ne.s32.totalorder %s141, %s142
    %p153 = scmp.eq.s32.totalorder %s18, 0
    %p154 = por %p152, %p153
    %p155 = scmp.ne.s32.totalorder %s141, %s142
    %p156 = scmp.eq.s32.totalorder %s19, 1
    %p157 = por %p155, %p156
    %p159 = scmp.ne.s32.totalorder %s142, %s158
    %p160 = scmp.eq.s32.totalorder %s19, 0
    %p161 = por %p159, %p160
    %s162 = ssub.s32 %s13, %s20
    %p163 = scmp.eq.s32.totalorder %s162, 0
    %s165 = sadd.s32 %s164, 1
    %s166 = scalar_select %p163, %s164, %s165
    %p169 = pneg %p163
    %p170 = scmp.eq.s32.totalorder %s13, 1
    %p171 = por %p169, %p170
    %p172 = scmp.ne.s32.totalorder %s164, %s167
    %p173 = scmp.eq.s32.totalorder %s13, 0
    %p174 = por %p172, %p173
    %p175 = scmp.ne.s32.totalorder %s164, %s167
    %p176 = scmp.eq.s32.totalorder %s18, 1
    %p177 = por %p175, %p176
    %p178 = scmp.ne.s32.totalorder %s167, %s168
    %p179 = scmp.eq.s32.totalorder %s18, 0
    %p180 = por %p178, %p179
    %p181 = scmp.ne.s32.totalorder %s167, %s168
    %p182 = scmp.eq.s32.totalorder %s19, 1
    %p183 = por %p181, %p182
    %p185 = scmp.ne.s32.totalorder %s168, %s184
    %p186 = scmp.eq.s32.totalorder %s19, 0
    %p187 = por %p185, %p186
    %p188 = scmp.le.s32.totalorder 1, %s13
    %p189 = scmp.lt.s32.totalorder %s13, 3
    %p190 = pnand %p188, %p189
    %p191 = pneg %p190
    // Predicated region
    $region9: #{single_conv.2} parent=5 // pred_check
      _
    $region10: #{single_conv.2} parent=5 // pred_check_branch
      %193 = sbr.rel (%p190) target = $region12
    $region11: #{single_conv.2} parent=5 // pred_region
      %s194 = ssub.s32 %s13, 1
      // Predicated region
      $region13: #{single_conv.2} parent=11 // pred_check
        %p195 = pneg %p60
      $region14: #{single_conv.2} parent=11 // pred_check_branch
        %197 = sbr.rel (%p195) target = $region16
      $region15: #{single_conv.2} parent=11 // pred_region
        _
      $region16: #{single_conv.2} parent=11 // pred_fallthru
        _
      // Predicated region
      $region17: #{single_conv.2} parent=11 // pred_check
        %p198 = pneg %p81
      $region18: #{single_conv.2} parent=11 // pred_check_branch
        %200 = sbr.rel (%p198) target = $region20
      $region19: #{single_conv.2} parent=11 // pred_region
        _
      $region20: #{single_conv.2} parent=11 // pred_fallthru
        _
      // Predicated region
      $region21: #{single_conv.2} parent=11 // pred_check
        %p201 = pneg %p102
      $region22: #{single_conv.2} parent=11 // pred_check_branch
        %203 = sbr.rel (%p201) target = $region24
      $region23: #{single_conv.2} parent=11 // pred_region
        _
      $region24: #{single_conv.2} parent=11 // pred_fallthru
        _
    $region12: #{single_conv.2} parent=5 // pred_fallthru
      _
    %p204 = scmp.lt.s32.totalorder %s13, 2
    // Predicated region
    $region25: #{single_conv.2} parent=5 // pred_check
      %p205 = pneg %p204
    $region26: #{single_conv.2} parent=5 // pred_check_branch
      %207 = sbr.rel (%p205) target = $region28
    $region27: #{single_conv.2} parent=5 // pred_region
      // Predicated region
      $region29: #{single_conv.2} parent=27 // pred_check
        %p208 = pneg %p33
      $region30: #{single_conv.2} parent=27 // pred_check_branch
        %210 = sbr.rel (%p208) target = $region32
      $region31: #{single_conv.2} parent=27 // pred_region
        %p211 = scmp.lt.s32.totalorder %s13, 1
        %s212 = scalar_select %p211, %s13, 1
        %s213 = smul.addr %s212, 2
        %s214 = smul.addr %s213, 4
        %s215 = scalar_lea.vmem %s0, %s214
      $region32: #{single_conv.2} parent=27 // pred_fallthru
        _
    $region28: #{single_conv.2} parent=5 // pred_fallthru
      _
    %p216 = scmp.le.s32.totalorder 1, %s13
    %p217 = scmp.lt.s32.totalorder %s13, 3
    %p218 = pnand %p216, %p217
    %p219 = pneg %p218
    // Predicated region
    $region33: #{single_conv.2} parent=5 // pred_check
      _
    $region34: #{single_conv.2} parent=5 // pred_check_branch
      %221 = sbr.rel (%p218) target = $region36
    $region35: #{single_conv.2} parent=5 // pred_region
      %s222 = ssub.s32 %s13, 1
      %p223 = scmp.lt.s32.totalorder %s18, 1
      %s224 = scalar_select %p223, %s18, 1
      %s225 = smul.addr %s224, 2
      %s226 = smul.addr %s225, 4
      %s227 = scalar_lea.vmem %s0, %s226
      %p228 = pneg %p39
      %p229 = pneg %p36
      %p230 = pneg %p60
      %p231 = pneg %p57
      %p232 = pneg %p81
      %p233 = pneg %p78
      %p234 = pneg %p102
      %p235 = pneg %p99
      %p236 = pneg %p128
      %p237 = pneg %p125
      %p238 = scmp.lt.s32.totalorder %s18, 1
      %s239 = scalar_select %p238, %s18, 1
      %s240 = smul.addr %s239, 2
      %s241 = smul.addr %s240, 4
      %s242 = scalar_lea.vmem %s4, %s241
      %p243 = pneg %p154
      %p244 = pneg %p151
      %p245 = scmp.lt.s32.totalorder %s18, 1
      %s246 = scalar_select %p245, %s18, 1
      %s247 = smul.addr %s246, 4
      %s248 = scalar_lea.vmem %s5, %s247
      %p249 = pneg %p180
      %p250 = pneg %p177
      %p251 = scmp.lt.s32.totalorder %s18, 1
      %s252 = scalar_select %p251, %s18, 1
      %s253 = smul.addr %s252, 4
      %s254 = scalar_lea.vmem %s6, %s253
      %p255 = scmp.lt.s32.totalorder %s18, 1
      %s256 = scalar_select %p255, %s18, 1
      %s257 = smul.addr %s256, 2
      %s258 = smul.addr %s257, 4
      %s259 = scalar_lea.vmem %s0, %s258
      %p260 = scmp.lt.s32.totalorder %s18, 1
      %s261 = scalar_select %p260, %s18, 1
      %s262 = smul.addr %s261, 2
      %s263 = smul.addr %s262, 4
      %s264 = scalar_lea.vmem %s4, %s263
      %p265 = scmp.lt.s32.totalorder %s18, 1
      %s266 = scalar_select %p265, %s18, 1
      %s267 = smul.addr %s266, 4
      %s268 = scalar_lea.vmem %s5, %s267
      %p269 = scmp.lt.s32.totalorder %s18, 1
      %s270 = scalar_select %p269, %s18, 1
      %s271 = smul.addr %s270, 4
      %s272 = scalar_lea.vmem %s6, %s271
      %v274 = vld [vmem:[%s259] sm:$0xff]
      %v275 = vld [vmem:[%s1] sm:$0x3]
      %v276 = vld [vmem:[%s1 + $0x2] sm:$0x3]
      %v277 = vld [vmem:[%s1 + $0x4] sm:$0x3]
      %v278 = vld [vmem:[%s1 + $0x6] sm:$0x3]
      %v279 = vld [vmem:[%s1 + $0x8] sm:$0x3]
      %v280 = vld [vmem:[%s1 + $0xa] sm:$0x3]
      %v281 = vld [vmem:[%s1 + $0xc] sm:$0x3]
      %v282 = vld [vmem:[%s1 + $0xe] sm:$0x3]
      %v283 = vld [vmem:[%s1 + $0x10] sm:$0x3]
      %v284 = vld [vmem:[%s2] sm:$0xff]
      %v285 = vld [vmem:[%s2 + $0x8] sm:$0xff]
      %v286 = vld [vmem:[%s2 + $0x10] sm:$0x1]
      %v287 = vld [vmem:[%s2 + $0x18] sm:$0x1]
      %v289 = vcombine.high %v274, %v274
      %291 = vrot.lane.b32.xlu0 %v274, 17
      %v292 = vpop.permute.xlu0 %291
      %293 = vrot.lane.b32.xlu0 %v289, 17
      %v294 = vpop.permute.xlu0 %293
      %v295 = vlaneseq
      %v296 = vand.u32 %v295, 127
      %vm297 = vcmp.lt.s32.totalorder %v296, 17
      %v298 = vsel %vm297, %v292, %v294
      %v299 = vsel %vm297, %v294, %v292
      %v300 = vlaneseq
      %v301 = vshrl.u32 %v300, 7
      %v302 = vsub.s32 0, %v301
      %v303 = vrot.slane %v284, %v302
      %v304 = vlaneseq
      %v305 = vshrl.u32 %v304, 7
      %v306 = vsub.s32 0, %v305
      %v307 = vrot.slane %v285, %v306
      %v308 = vmul.f32 %v299, %v303
      %v309 = vmul.f32 %v298, %v307
      %v310 = vpack.c.bf16 %v308, %v308
      %v311 = vpack.c.bf16 %v309, %v309
      %312 = vrot.lane.b32.xlu0 %v274, 16
      %v313 = vpop.permute.xlu0 %312
      %314 = vrot.lane.b32.xlu0 %v289, 16
      %v315 = vpop.permute.xlu0 %314
      %vm316 = vcmp.lt.s32.totalorder %v296, 16
      %v317 = vsel %vm316, %v313, %v315
      %v318 = vsel %vm316, %v315, %v313
      %v319 = vlaneseq
      %v320 = vshrl.u32 %v319, 7
      %v321 = vsub.s32 1, %v320
      %v322 = vrot.slane %v284, %v321
      %v323 = vlaneseq
      %v324 = vshrl.u32 %v323, 7
      %v325 = vsub.s32 1, %v324
      %v326 = vrot.slane %v285, %v325
      %v327 = vmul.f32 %v318, %v322
      %v328 = vmul.f32 %v317, %v326
      %v329 = vpack.c.bf16 %v327, %v327
      %v330 = vpack.c.bf16 %v328, %v328
      %vm331 = vcmask 31744
      %v333 = vsel %vm331, %v276, 0
      %vm335 = vcmask 1041408
      %v337 = vsel %vm335, %v329, 0
      %v340 = vsel %vm335, %v330, 0
      %342 = vmatprep.subr.bf16.mxu0 0
      %343 = vmatpush1.bf16.msra.mxu0 0
      %344 = vmatprep.subr.bf16.mxu0 0
      %345 = vmatpush1.bf16.msra.mxu0 0
      %346 = vmatprep.subr.bf16.mxu0 0
      %347 = vmatpush1.bf16.msra.mxu0 0
      %348 = vmatprep.subr.bf16.mxu0 0
      %349 = vmatpush1.bf16.msra.mxu0 0
      %350 = vmatprep.subr.bf16.mxu0 0
      %351 = vmatpush1.bf16.msra.mxu0 0
      %352 = vmatprep.subr.bf16.mxu0 0
      %353 = vmatpush1.bf16.msra.mxu0 0
      %354 = vmatprep.subr.bf16.mxu0 0
      %355 = vmatpush1.bf16.msra.mxu0 0
      %356 = vmatprep.subr.bf16.mxu0 %v340
      %357 = vmatpush1.bf16.msra.mxu0 %v337
      %358 = vmatprep.subr.bf16.mxu0 0
      %359 = vmatpush2.bf16.msra.mxu0 0
      %360 = vmatprep.subr.bf16.mxu0 0
      %361 = vmatpush2.bf16.msra.mxu0 0
      %362 = vmatprep.subr.bf16.mxu0 0
      %363 = vmatpush2.bf16.msra.mxu0 0
      %364 = vmatprep.subr.bf16.mxu0 0
      %365 = vmatpush2.bf16.msra.mxu0 0
      %366 = vmatprep.subr.bf16.mxu0 0
      %367 = vmatpush2.bf16.msra.mxu0 0
      %368 = vmatprep.subr.bf16.mxu0 0
      %369 = vmatpush2.bf16.msra.mxu0 0
      %370 = vmatprep.subr.bf16.mxu0 0
      %371 = vmatpush2.bf16.msra.mxu0 0
      %372 = vmatprep.subr.bf16.mxu0 0
      %373 = vmatpush2.bf16.msra.mxu0 0
      %374 = vmatprep.mubr.bf16.mxu0 0
      %375 = vmatmul.mubr.bf16.gmra.mxu0 %v333
      %v376 = vpop.f32.mrf.mxu0
      %v377 = vadd.f32 0.0, %v376
      %v378 = vpop.f32.mrf.mxu0
      %v379 = vadd.f32 0.0, %v378
      %v380 = vpop.f32.mrf.mxu0
      %v381 = vpop.f32.mrf.mxu0
      %382 = vdwg.mxu0
      %v384 = vsel %vm331, %v275, 0
      %v387 = vsel %vm335, %v310, 0
      %v390 = vsel %vm335, %v311, 0
      %392 = vmatprep.subr.bf16.mxu0 0
      %393 = vmatpush1.bf16.msra.mxu0 0
      %394 = vmatprep.subr.bf16.mxu0 0
      %395 = vmatpush1.bf16.msra.mxu0 0
      %396 = vmatprep.subr.bf16.mxu0 0
      %397 = vmatpush1.bf16.msra.mxu0 0
      %398 = vmatprep.subr.bf16.mxu0 0
      %399 = vmatpush1.bf16.msra.mxu0 0
      %400 = vmatprep.subr.bf16.mxu0 0
      %401 = vmatpush1.bf16.msra.mxu0 0
      %402 = vmatprep.subr.bf16.mxu0 0
      %403 = vmatpush1.bf16.msra.mxu0 0
      %404 = vmatprep.subr.bf16.mxu0 0
      %405 = vmatpush1.bf16.msra.mxu0 0
      %406 = vmatprep.subr.bf16.mxu0 %v390
      %407 = vmatpush1.bf16.msra.mxu0 %v387
      %408 = vmatprep.subr.bf16.mxu0 0
      %409 = vmatpush2.bf16.msra.mxu0 0
      %410 = vmatprep.subr.bf16.mxu0 0
      %411 = vmatpush2.bf16.msra.mxu0 0
      %412 = vmatprep.subr.bf16.mxu0 0
      %413 = vmatpush2.bf16.msra.mxu0 0
      %414 = vmatprep.subr.bf16.mxu0 0
      %415 = vmatpush2.bf16.msra.mxu0 0
      %416 = vmatprep.subr.bf16.mxu0 0
      %417 = vmatpush2.bf16.msra.mxu0 0
      %418 = vmatprep.subr.bf16.mxu0 0
      %419 = vmatpush2.bf16.msra.mxu0 0
      %420 = vmatprep.subr.bf16.mxu0 0
      %421 = vmatpush2.bf16.msra.mxu0 0
      %422 = vmatprep.subr.bf16.mxu0 0
      %423 = vmatpush2.bf16.msra.mxu0 0
      %424 = vmatprep.mubr.bf16.mxu0 0
      %425 = vmatmul.mubr.bf16.gmra.mxu0 %v384
      %v426 = vpop.f32.mrf.mxu0
      %v427 = vadd.f32 %v377, %v426
      %v428 = vpop.f32.mrf.mxu0
      %v429 = vadd.f32 %v379, %v428
      %v430 = vpop.f32.mrf.mxu0
      %v431 = vpop.f32.mrf.mxu0
      %432 = vdwg.mxu0
      %433 = vrot.lane.b32.xlu0 %v274, 15
      %v434 = vpop.permute.xlu0 %433
      %435 = vrot.lane.b32.xlu0 %v289, 15
      %v436 = vpop.permute.xlu0 %435
      %vm437 = vcmp.lt.s32.totalorder %v296, 15
      %v438 = vsel %vm437, %v434, %v436
      %v439 = vsel %vm437, %v436, %v434
      %v440 = vlaneseq
      %v441 = vshrl.u32 %v440, 7
      %v442 = vsub.s32 2, %v441
      %v443 = vrot.slane %v284, %v442
      %v444 = vlaneseq
      %v445 = vshrl.u32 %v444, 7
      %v446 = vsub.s32 2, %v445
      %v447 = vrot.slane %v285, %v446
      %v448 = vmul.f32 %v439, %v443
      %v449 = vmul.f32 %v438, %v447
      %v450 = vpack.c.bf16 %v448, %v448
      %v451 = vpack.c.bf16 %v449, %v449
      %v453 = vsel %vm331, %v277, 0
      %v456 = vsel %vm335, %v450, 0
      %v459 = vsel %vm335, %v451, 0
      %461 = vmatprep.subr.bf16.mxu0 0
      %462 = vmatpush1.bf16.msra.mxu0 0
      %463 = vmatprep.subr.bf16.mxu0 0
      %464 = vmatpush1.bf16.msra.mxu0 0
      %465 = vmatprep.subr.bf16.mxu0 0
      %466 = vmatpush1.bf16.msra.mxu0 0
      %467 = vmatprep.subr.bf16.mxu0 0
      %468 = vmatpush1.bf16.msra.mxu0 0
      %469 = vmatprep.subr.bf16.mxu0 0
      %470 = vmatpush1.bf16.msra.mxu0 0
      %471 = vmatprep.subr.bf16.mxu0 0
      %472 = vmatpush1.bf16.msra.mxu0 0
      %473 = vmatprep.subr.bf16.mxu0 0
      %474 = vmatpush1.bf16.msra.mxu0 0
      %475 = vmatprep.subr.bf16.mxu0 %v459
      %476 = vmatpush1.bf16.msra.mxu0 %v456
      %477 = vmatprep.subr.bf16.mxu0 0
      %478 = vmatpush2.bf16.msra.mxu0 0
      %479 = vmatprep.subr.bf16.mxu0 0
      %480 = vmatpush2.bf16.msra.mxu0 0
      %481 = vmatprep.subr.bf16.mxu0 0
      %482 = vmatpush2.bf16.msra.mxu0 0
      %483 = vmatprep.subr.bf16.mxu0 0
      %484 = vmatpush2.bf16.msra.mxu0 0
      %485 = vmatprep.subr.bf16.mxu0 0
      %486 = vmatpush2.bf16.msra.mxu0 0
      %487 = vmatprep.subr.bf16.mxu0 0
      %488 = vmatpush2.bf16.msra.mxu0 0
      %489 = vmatprep.subr.bf16.mxu0 0
      %490 = vmatpush2.bf16.msra.mxu0 0
      %491 = vmatprep.subr.bf16.mxu0 0
      %492 = vmatpush2.bf16.msra.mxu0 0
      %493 = vmatprep.mubr.bf16.mxu0 0
      %494 = vmatmul.mubr.bf16.gmra.mxu0 %v453
      %v495 = vpop.f32.mrf.mxu0
      %v496 = vadd.f32 0.0, %v495
      %v497 = vpop.f32.mrf.mxu0
      %v498 = vadd.f32 0.0, %v497
      %v499 = vpop.f32.mrf.mxu0
      %v500 = vpop.f32.mrf.mxu0
      %501 = vdwg.mxu0
      %v502 = vadd.f32 %v427, %v496
      %v503 = vadd.f32 %v429, %v498
      %504 = vrot.lane.b32.xlu0 %v274, 1
      %v505 = vpop.permute.xlu0 %504
      %506 = vrot.lane.b32.xlu0 %v289, 1
      %v507 = vpop.permute.xlu0 %506
      %vm508 = vcmp.lt.s32.totalorder %v296, 1
      %v509 = vsel %vm508, %v505, %v507
      %v510 = vsel %vm508, %v507, %v505
      %v511 = vlaneseq
      %v512 = vshrl.u32 %v511, 7
      %v513 = vsub.s32 3, %v512
      %v514 = vrot.slane %v284, %v513
      %v515 = vlaneseq
      %v516 = vshrl.u32 %v515, 7
      %v517 = vsub.s32 3, %v516
      %v518 = vrot.slane %v285, %v517
      %v519 = vmul.f32 %v510, %v514
      %v520 = vmul.f32 %v509, %v518
      %v521 = vpack.c.bf16 %v519, %v519
      %v522 = vpack.c.bf16 %v520, %v520
      %v524 = vsel %vm331, %v278, 0
      %v527 = vsel %vm335, %v521, 0
      %v530 = vsel %vm335, %v522, 0
      %532 = vmatprep.subr.bf16.mxu0 0
      %533 = vmatpush1.bf16.msra.mxu0 0
      %534 = vmatprep.subr.bf16.mxu0 0
      %535 = vmatpush1.bf16.msra.mxu0 0
      %536 = vmatprep.subr.bf16.mxu0 0
      %537 = vmatpush1.bf16.msra.mxu0 0
      %538 = vmatprep.subr.bf16.mxu0 0
      %539 = vmatpush1.bf16.msra.mxu0 0
      %540 = vmatprep.subr.bf16.mxu0 0
      %541 = vmatpush1.bf16.msra.mxu0 0
      %542 = vmatprep.subr.bf16.mxu0 0
      %543 = vmatpush1.bf16.msra.mxu0 0
      %544 = vmatprep.subr.bf16.mxu0 0
      %545 = vmatpush1.bf16.msra.mxu0 0
      %546 = vmatprep.subr.bf16.mxu0 %v530
      %547 = vmatpush1.bf16.msra.mxu0 %v527
      %548 = vmatprep.subr.bf16.mxu0 0
      %549 = vmatpush2.bf16.msra.mxu0 0
      %550 = vmatprep.subr.bf16.mxu0 0
      %551 = vmatpush2.bf16.msra.mxu0 0
      %552 = vmatprep.subr.bf16.mxu0 0
      %553 = vmatpush2.bf16.msra.mxu0 0
      %554 = vmatprep.subr.bf16.mxu0 0
      %555 = vmatpush2.bf16.msra.mxu0 0
      %556 = vmatprep.subr.bf16.mxu0 0
      %557 = vmatpush2.bf16.msra.mxu0 0
      %558 = vmatprep.subr.bf16.mxu0 0
      %559 = vmatpush2.bf16.msra.mxu0 0
      %560 = vmatprep.subr.bf16.mxu0 0
      %561 = vmatpush2.bf16.msra.mxu0 0
      %562 = vmatprep.subr.bf16.mxu0 0
      %563 = vmatpush2.bf16.msra.mxu0 0
      %564 = vmatprep.mubr.bf16.mxu0 0
      %565 = vmatmul.mubr.bf16.gmra.mxu0 %v524
      %v566 = vpop.f32.mrf.mxu0
      %v567 = vadd.f32 0.0, %v566
      %v568 = vpop.f32.mrf.mxu0
      %v569 = vadd.f32 0.0, %v568
      %v570 = vpop.f32.mrf.mxu0
      %v571 = vpop.f32.mrf.mxu0
      %572 = vdwg.mxu0
      %v573 = vadd.f32 %v502, %v567
      %v574 = vadd.f32 %v503, %v569
      %v575 = vpack.c.bf16 %v274, %v274
      %v576 = vpack.c.bf16 %v289, %v289
      %v578 = vsel %vm331, %v279, 0
      %v581 = vsel %vm335, %v575, 0
      %v584 = vsel %vm335, %v576, 0
      %586 = vmatprep.subr.bf16.mxu0 0
      %587 = vmatpush1.bf16.msra.mxu0 0
      %588 = vmatprep.subr.bf16.mxu0 0
      %589 = vmatpush1.bf16.msra.mxu0 0
      %590 = vmatprep.subr.bf16.mxu0 0
      %591 = vmatpush1.bf16.msra.mxu0 0
      %592 = vmatprep.subr.bf16.mxu0 0
      %593 = vmatpush1.bf16.msra.mxu0 0
      %594 = vmatprep.subr.bf16.mxu0 0
      %595 = vmatpush1.bf16.msra.mxu0 0
      %596 = vmatprep.subr.bf16.mxu0 0
      %597 = vmatpush1.bf16.msra.mxu0 0
      %598 = vmatprep.subr.bf16.mxu0 0
      %599 = vmatpush1.bf16.msra.mxu0 0
      %600 = vmatprep.subr.bf16.mxu0 %v584
      %601 = vmatpush1.bf16.msra.mxu0 %v581
      %602 = vmatprep.subr.bf16.mxu0 0
      %603 = vmatpush2.bf16.msra.mxu0 0
      %604 = vmatprep.subr.bf16.mxu0 0
      %605 = vmatpush2.bf16.msra.mxu0 0
      %606 = vmatprep.subr.bf16.mxu0 0
      %607 = vmatpush2.bf16.msra.mxu0 0
      %608 = vmatprep.subr.bf16.mxu0 0
      %609 = vmatpush2.bf16.msra.mxu0 0
      %610 = vmatprep.subr.bf16.mxu0 0
      %611 = vmatpush2.bf16.msra.mxu0 0
      %612 = vmatprep.subr.bf16.mxu0 0
      %613 = vmatpush2.bf16.msra.mxu0 0
      %614 = vmatprep.subr.bf16.mxu0 0
      %615 = vmatpush2.bf16.msra.mxu0 0
      %616 = vmatprep.subr.bf16.mxu0 0
      %617 = vmatpush2.bf16.msra.mxu0 0
      %618 = vmatprep.mubr.bf16.mxu0 0
      %619 = vmatmul.mubr.bf16.gmra.mxu0 %v578
      %v620 = vpop.f32.mrf.mxu0
      %v621 = vadd.f32 0.0, %v620
      %v622 = vpop.f32.mrf.mxu0
      %v623 = vadd.f32 0.0, %v622
      %v624 = vpop.f32.mrf.mxu0
      %v625 = vpop.f32.mrf.mxu0
      %626 = vdwg.mxu0
      %v627 = vadd.f32 %v573, %v621
      %v628 = vadd.f32 %v574, %v623
      %629 = vrot.lane.b32.xlu0 %v274, 127
      %v630 = vpop.permute.xlu0 %629
      %631 = vrot.lane.b32.xlu0 %v289, 127
      %v632 = vpop.permute.xlu0 %631
      %vm633 = vcmp.lt.s32.totalorder %v296, 127
      %v634 = vsel %vm633, %v630, %v632
      %v635 = vsel %vm633, %v632, %v630
      %v636 = vlaneseq
      %v637 = vshrl.u32 %v636, 7
      %v638 = vsub.s32 5, %v637
      %v639 = vrot.slane %v284, %v638
      %v640 = vlaneseq
      %v641 = vshrl.u32 %v640, 7
      %v642 = vsub.s32 5, %v641
      %v643 = vrot.slane %v285, %v642
      %v644 = vmul.f32 %v634, %v639
      %v645 = vmul.f32 %v635, %v643
      %v646 = vpack.c.bf16 %v644, %v644
      %v647 = vpack.c.bf16 %v645, %v645
      %v649 = vsel %vm331, %v280, 0
      %v652 = vsel %vm335, %v646, 0
      %v655 = vsel %vm335, %v647, 0
      %657 = vmatprep.subr.bf16.mxu0 0
      %658 = vmatpush1.bf16.msra.mxu0 0
      %659 = vmatprep.subr.bf16.mxu0 0
      %660 = vmatpush1.bf16.msra.mxu0 0
      %661 = vmatprep.subr.bf16.mxu0 0
      %662 = vmatpush1.bf16.msra.mxu0 0
      %663 = vmatprep.subr.bf16.mxu0 0
      %664 = vmatpush1.bf16.msra.mxu0 0
      %665 = vmatprep.subr.bf16.mxu0 0
      %666 = vmatpush1.bf16.msra.mxu0 0
      %667 = vmatprep.subr.bf16.mxu0 0
      %668 = vmatpush1.bf16.msra.mxu0 0
      %669 = vmatprep.subr.bf16.mxu0 0
      %670 = vmatpush1.bf16.msra.mxu0 0
      %671 = vmatprep.subr.bf16.mxu0 %v655
      %672 = vmatpush1.bf16.msra.mxu0 %v652
      %673 = vmatprep.subr.bf16.mxu0 0
      %674 = vmatpush2.bf16.msra.mxu0 0
      %675 = vmatprep.subr.bf16.mxu0 0
      %676 = vmatpush2.bf16.msra.mxu0 0
      %677 = vmatprep.subr.bf16.mxu0 0
      %678 = vmatpush2.bf16.msra.mxu0 0
      %679 = vmatprep.subr.bf16.mxu0 0
      %680 = vmatpush2.bf16.msra.mxu0 0
      %681 = vmatprep.subr.bf16.mxu0 0
      %682 = vmatpush2.bf16.msra.mxu0 0
      %683 = vmatprep.subr.bf16.mxu0 0
      %684 = vmatpush2.bf16.msra.mxu0 0
      %685 = vmatprep.subr.bf16.mxu0 0
      %686 = vmatpush2.bf16.msra.mxu0 0
      %687 = vmatprep.subr.bf16.mxu0 0
      %688 = vmatpush2.bf16.msra.mxu0 0
      %689 = vmatprep.mubr.bf16.mxu0 0
      %690 = vmatmul.mubr.bf16.gmra.mxu0 %v649
      %v691 = vpop.f32.mrf.mxu0
      %v692 = vadd.f32 0.0, %v691
      %v693 = vpop.f32.mrf.mxu0
      %v694 = vadd.f32 0.0, %v693
      %v695 = vpop.f32.mrf.mxu0
      %v696 = vpop.f32.mrf.mxu0
      %697 = vdwg.mxu0
      %v698 = vadd.f32 %v627, %v692
      %v699 = vadd.f32 %v628, %v694
      %700 = vrot.lane.b32.xlu0 %v274, 113
      %v701 = vpop.permute.xlu0 %700
      %702 = vrot.lane.b32.xlu0 %v289, 113
      %v703 = vpop.permute.xlu0 %702
      %vm704 = vcmp.lt.s32.totalorder %v296, 113
      %v705 = vsel %vm704, %v701, %v703
      %v706 = vsel %vm704, %v703, %v701
      %v707 = vlaneseq
      %v708 = vshrl.u32 %v707, 7
      %v709 = vsub.s32 6, %v708
      %v710 = vrot.slane %v284, %v709
      %v711 = vlaneseq
      %v712 = vshrl.u32 %v711, 7
      %v713 = vsub.s32 6, %v712
      %v714 = vrot.slane %v285, %v713
      %v715 = vmul.f32 %v705, %v710
      %v716 = vmul.f32 %v706, %v714
      %v717 = vpack.c.bf16 %v715, %v715
      %v718 = vpack.c.bf16 %v716, %v716
      %v720 = vsel %vm331, %v281, 0
      %v723 = vsel %vm335, %v717, 0
      %v726 = vsel %vm335, %v718, 0
      %728 = vmatprep.subr.bf16.mxu0 0
      %729 = vmatpush1.bf16.msra.mxu0 0
      %730 = vmatprep.subr.bf16.mxu0 0
      %731 = vmatpush1.bf16.msra.mxu0 0
      %732 = vmatprep.subr.bf16.mxu0 0
      %733 = vmatpush1.bf16.msra.mxu0 0
      %734 = vmatprep.subr.bf16.mxu0 0
      %735 = vmatpush1.bf16.msra.mxu0 0
      %736 = vmatprep.subr.bf16.mxu0 0
      %737 = vmatpush1.bf16.msra.mxu0 0
      %738 = vmatprep.subr.bf16.mxu0 0
      %739 = vmatpush1.bf16.msra.mxu0 0
      %740 = vmatprep.subr.bf16.mxu0 0
      %741 = vmatpush1.bf16.msra.mxu0 0
      %742 = vmatprep.subr.bf16.mxu0 %v726
      %743 = vmatpush1.bf16.msra.mxu0 %v723
      %744 = vmatprep.subr.bf16.mxu0 0
      %745 = vmatpush2.bf16.msra.mxu0 0
      %746 = vmatprep.subr.bf16.mxu0 0
      %747 = vmatpush2.bf16.msra.mxu0 0
      %748 = vmatprep.subr.bf16.mxu0 0
      %749 = vmatpush2.bf16.msra.mxu0 0
      %750 = vmatprep.subr.bf16.mxu0 0
      %751 = vmatpush2.bf16.msra.mxu0 0
      %752 = vmatprep.subr.bf16.mxu0 0
      %753 = vmatpush2.bf16.msra.mxu0 0
      %754 = vmatprep.subr.bf16.mxu0 0
      %755 = vmatpush2.bf16.msra.mxu0 0
      %756 = vmatprep.subr.bf16.mxu0 0
      %757 = vmatpush2.bf16.msra.mxu0 0
      %758 = vmatprep.subr.bf16.mxu0 0
      %759 = vmatpush2.bf16.msra.mxu0 0
      %760 = vmatprep.mubr.bf16.mxu0 0
      %761 = vmatmul.mubr.bf16.gmra.mxu0 %v720
      %v762 = vpop.f32.mrf.mxu0
      %v763 = vadd.f32 0.0, %v762
      %v764 = vpop.f32.mrf.mxu0
      %v765 = vadd.f32 0.0, %v764
      %v766 = vpop.f32.mrf.mxu0
      %v767 = vpop.f32.mrf.mxu0
      %768 = vdwg.mxu0
      %v769 = vadd.f32 %v698, %v763
      %v770 = vadd.f32 %v699, %v765
      %771 = vrot.lane.b32.xlu0 %v274, 112
      %v772 = vpop.permute.xlu0 %771
      %773 = vrot.lane.b32.xlu0 %v289, 112
      %v774 = vpop.permute.xlu0 %773
      %vm775 = vcmp.lt.s32.totalorder %v296, 112
      %v776 = vsel %vm775, %v772, %v774
      %v777 = vsel %vm775, %v774, %v772
      %v778 = vlaneseq
      %v779 = vshrl.u32 %v778, 7
      %v780 = vsub.s32 7, %v779
      %v781 = vrot.slane %v284, %v780
      %v782 = vlaneseq
      %v783 = vshrl.u32 %v782, 7
      %v784 = vsub.s32 7, %v783
      %v785 = vrot.slane %v285, %v784
      %v786 = vmul.f32 %v776, %v781
      %v787 = vmul.f32 %v777, %v785
      %v788 = vpack.c.bf16 %v786, %v786
      %v789 = vpack.c.bf16 %v787, %v787
      %v791 = vsel %vm331, %v282, 0
      %v794 = vsel %vm335, %v788, 0
      %v797 = vsel %vm335, %v789, 0
      %799 = vmatprep.subr.bf16.mxu0 0
      %800 = vmatpush1.bf16.msra.mxu0 0
      %801 = vmatprep.subr.bf16.mxu0 0
      %802 = vmatpush1.bf16.msra.mxu0 0
      %803 = vmatprep.subr.bf16.mxu0 0
      %804 = vmatpush1.bf16.msra.mxu0 0
      %805 = vmatprep.subr.bf16.mxu0 0
      %806 = vmatpush1.bf16.msra.mxu0 0
      %807 = vmatprep.subr.bf16.mxu0 0
      %808 = vmatpush1.bf16.msra.mxu0 0
      %809 = vmatprep.subr.bf16.mxu0 0
      %810 = vmatpush1.bf16.msra.mxu0 0
      %811 = vmatprep.subr.bf16.mxu0 0
      %812 = vmatpush1.bf16.msra.mxu0 0
      %813 = vmatprep.subr.bf16.mxu0 %v797
      %814 = vmatpush1.bf16.msra.mxu0 %v794
      %815 = vmatprep.subr.bf16.mxu0 0
      %816 = vmatpush2.bf16.msra.mxu0 0
      %817 = vmatprep.subr.bf16.mxu0 0
      %818 = vmatpush2.bf16.msra.mxu0 0
      %819 = vmatprep.subr.bf16.mxu0 0
      %820 = vmatpush2.bf16.msra.mxu0 0
      %821 = vmatprep.subr.bf16.mxu0 0
      %822 = vmatpush2.bf16.msra.mxu0 0
      %823 = vmatprep.subr.bf16.mxu0 0
      %824 = vmatpush2.bf16.msra.mxu0 0
      %825 = vmatprep.subr.bf16.mxu0 0
      %826 = vmatpush2.bf16.msra.mxu0 0
      %827 = vmatprep.subr.bf16.mxu0 0
      %828 = vmatpush2.bf16.msra.mxu0 0
      %829 = vmatprep.subr.bf16.mxu0 0
      %830 = vmatpush2.bf16.msra.mxu0 0
      %831 = vmatprep.mubr.bf16.mxu0 0
      %832 = vmatmul.mubr.bf16.gmra.mxu0 %v791
      %v833 = vpop.f32.mrf.mxu0
      %v834 = vadd.f32 0.0, %v833
      %v835 = vpop.f32.mrf.mxu0
      %v836 = vadd.f32 0.0, %v835
      %v837 = vpop.f32.mrf.mxu0
      %v838 = vpop.f32.mrf.mxu0
      %839 = vdwg.mxu0
      %v840 = vadd.f32 %v769, %v834
      %v841 = vadd.f32 %v770, %v836
      %842 = vrot.lane.b32.xlu0 %v274, 111
      %v843 = vpop.permute.xlu0 %842
      %844 = vrot.lane.b32.xlu0 %v289, 111
      %v845 = vpop.permute.xlu0 %844
      %vm846 = vcmp.lt.s32.totalorder %v296, 111
      %v847 = vsel %vm846, %v843, %v845
      %v848 = vsel %vm846, %v845, %v843
      %v849 = vlaneseq
      %v850 = vshrl.u32 %v849, 7
      %v851 = vsub.s32 0, %v850
      %v852 = vrot.slane %v286, %v851
      %v853 = vlaneseq
      %v854 = vshrl.u32 %v853, 7
      %v855 = vsub.s32 0, %v854
      %v856 = vrot.slane %v287, %v855
      %v857 = vmul.f32 %v847, %v852
      %v858 = vmul.f32 %v848, %v856
      %v859 = vpack.c.bf16 %v857, %v857
      %v860 = vpack.c.bf16 %v858, %v858
      %v862 = vsel %vm331, %v283, 0
      %v865 = vsel %vm335, %v859, 0
      %v868 = vsel %vm335, %v860, 0
      %870 = vmatprep.subr.bf16.mxu0 0
      %871 = vmatpush1.bf16.msra.mxu0 0
      %872 = vmatprep.subr.bf16.mxu0 0
      %873 = vmatpush1.bf16.msra.mxu0 0
      %874 = vmatprep.subr.bf16.mxu0 0
      %875 = vmatpush1.bf16.msra.mxu0 0
      %876 = vmatprep.subr.bf16.mxu0 0
      %877 = vmatpush1.bf16.msra.mxu0 0
      %878 = vmatprep.subr.bf16.mxu0 0
      %879 = vmatpush1.bf16.msra.mxu0 0
      %880 = vmatprep.subr.bf16.mxu0 0
      %881 = vmatpush1.bf16.msra.mxu0 0
      %882 = vmatprep.subr.bf16.mxu0 0
      %883 = vmatpush1.bf16.msra.mxu0 0
      %884 = vmatprep.subr.bf16.mxu0 %v868
      %885 = vmatpush1.bf16.msra.mxu0 %v865
      %886 = vmatprep.subr.bf16.mxu0 0
      %887 = vmatpush2.bf16.msra.mxu0 0
      %888 = vmatprep.subr.bf16.mxu0 0
      %889 = vmatpush2.bf16.msra.mxu0 0
      %890 = vmatprep.subr.bf16.mxu0 0
      %891 = vmatpush2.bf16.msra.mxu0 0
      %892 = vmatprep.subr.bf16.mxu0 0
      %893 = vmatpush2.bf16.msra.mxu0 0
      %894 = vmatprep.subr.bf16.mxu0 0
      %895 = vmatpush2.bf16.msra.mxu0 0
      %896 = vmatprep.subr.bf16.mxu0 0
      %897 = vmatpush2.bf16.msra.mxu0 0
      %898 = vmatprep.subr.bf16.mxu0 0
      %899 = vmatpush2.bf16.msra.mxu0 0
      %900 = vmatprep.subr.bf16.mxu0 0
      %901 = vmatpush2.bf16.msra.mxu0 0
      %902 = vmatprep.mubr.bf16.mxu0 0
      %903 = vmatmul.mubr.bf16.gmra.mxu0 %v862
      %v904 = vpop.f32.mrf.mxu0
      %v905 = vadd.f32 0.0, %v904
      %v906 = vpop.f32.mrf.mxu0
      %v907 = vadd.f32 0.0, %v906
      %v908 = vpop.f32.mrf.mxu0
      %v909 = vpop.f32.mrf.mxu0
      %910 = vdwg.mxu0
      %v911 = vadd.f32 %v840, %v905
      %v912 = vadd.f32 %v841, %v907
      %v913 = vld [vmem:[%s3] sm:$0xf]
      %915 = vset.pattern.permute.xlu0 0
      %916 = vperm.xlu0 %915, %v913
      %v917 = vpop.permute.xlu0 %916
      %v919 = vadd.f32 %v911, %v917
      %v920 = vadd.f32 %v912, %v917
      %v923 = vcombine.low %v919, %v920
      %925 = vst [vmem:[%s264] sm:$0xff] %v923
      %vm926 = vcmask 1043456
      %v927 = vsel %vm926, %v919, 0.0
      %v928 = vsel %vm926, %v920, 0.0
      %v929 = vadd.f32 %v927, %v928
      %930 = vadd.xlane.f32.xlu0 %v929
      %v931 = vpop.xlane.xlu0 %930
      %vm932 = vcmask 3072
      %933 = vst.msk [vmem:[%s268] sm:$0xf] %vm932, %v931
      %v934 = vmul.f32 %v919, %v919
      %v935 = vmul.f32 %v920, %v920
      %v936 = vsel %vm926, %v934, 0.0
      %v937 = vsel %vm926, %v935, 0.0
      %v938 = vadd.f32 %v936, %v937
      %939 = vadd.xlane.f32.xlu0 %v938
      %v940 = vpop.xlane.xlu0 %939
      %941 = vst.msk [vmem:[%s272] sm:$0xf] %vm932, %v940
      %p942 = scmp.lt.s32.totalorder %s18, 1
      %s943 = scalar_select %p942, %s18, 1
      %s944 = smul.addr %s943, 2
      %s945 = smul.addr %s944, 4
      %s946 = scalar_lea.vmem %s4, %s945
      %p947 = scmp.lt.s32.totalorder %s18, 1
      %s948 = scalar_select %p947, %s18, 1
      %s949 = smul.addr %s948, 4
      %s950 = scalar_lea.vmem %s5, %s949
      %p951 = scmp.lt.s32.totalorder %s18, 1
      %s952 = scalar_select %p951, %s18, 1
      %s953 = smul.addr %s952, 4
      %s954 = scalar_lea.vmem %s6, %s953
      // Predicated region
      $region37: #{single_conv.2} parent=35 // pred_check
        %p955 = pneg %p125
      $region38: #{single_conv.2} parent=35 // pred_check_branch
        %957 = sbr.rel (%p955) target = $region40
      $region39: #{single_conv.2} parent=35 // pred_region
        _
      $region40: #{single_conv.2} parent=35 // pred_fallthru
        _
      // Predicated region
      $region41: #{single_conv.2} parent=35 // pred_check
        %p958 = pneg %p151
      $region42: #{single_conv.2} parent=35 // pred_check_branch
        %960 = sbr.rel (%p958) target = $region44
      $region43: #{single_conv.2} parent=35 // pred_region
        _
      $region44: #{single_conv.2} parent=35 // pred_fallthru
        _
      // Predicated region
      $region45: #{single_conv.2} parent=35 // pred_check
        %p961 = pneg %p177
      $region46: #{single_conv.2} parent=35 // pred_check_branch
        %963 = sbr.rel (%p961) target = $region48
      $region47: #{single_conv.2} parent=35 // pred_region
        _
      $region48: #{single_conv.2} parent=35 // pred_fallthru
        _
    $region36: #{single_conv.2} parent=5 // pred_fallthru
      _
    %p964 = scmp.le.s32.totalorder 2, %s13
    // Predicated region
    $region49: #{single_conv.2} parent=5 // pred_check
      %p965 = pneg %p964
    $region50: #{single_conv.2} parent=5 // pred_check_branch
      %967 = sbr.rel (%p965) target = $region52
    $region51: #{single_conv.2} parent=5 // pred_region
      %s968 = ssub.s32 %s13, 2
      // Predicated region
      $region53: #{single_conv.2} parent=51 // pred_check
        %p969 = pneg %p131
      $region54: #{single_conv.2} parent=51 // pred_check_branch
        %971 = sbr.rel (%p969) target = $region56
      $region55: #{single_conv.2} parent=51 // pred_region
        %p972 = scmp.lt.s32.totalorder %s19, 1
        %s973 = scalar_select %p972, %s19, 1
        %s974 = smul.addr %s973, 2
        %s975 = smul.addr %s974, 4
        %s976 = scalar_lea.vmem %s4, %s975
      $region56: #{single_conv.2} parent=51 // pred_fallthru
        _
      // Predicated region
      $region57: #{single_conv.2} parent=51 // pred_check
        %p977 = pneg %p157
      $region58: #{single_conv.2} parent=51 // pred_check_branch
        %979 = sbr.rel (%p977) target = $region60
      $region59: #{single_conv.2} parent=51 // pred_region
        %p980 = scmp.lt.s32.totalorder %s19, 1
        %s981 = scalar_select %p980, %s19, 1
        %s982 = smul.addr %s981, 4
        %s983 = scalar_lea.vmem %s5, %s982
      $region60: #{single_conv.2} parent=51 // pred_fallthru
        _
      // Predicated region
      $region61: #{single_conv.2} parent=51 // pred_check
        %p984 = pneg %p183
      $region62: #{single_conv.2} parent=51 // pred_check_branch
        %986 = sbr.rel (%p984) target = $region64
      $region63: #{single_conv.2} parent=51 // pred_region
        %p987 = scmp.lt.s32.totalorder %s19, 1
        %s988 = scalar_select %p987, %s19, 1
        %s989 = smul.addr %s988, 4
        %s990 = scalar_lea.vmem %s6, %s989
      $region64: #{single_conv.2} parent=51 // pred_fallthru
        _
    $region52: #{single_conv.2} parent=5 // pred_fallthru
      _
  $region6: #{single_conv.2} parent=0 // loop_footer
    %s17 = sadd.s32 1, %s13
  $region7: #{single_conv.2} parent=0 // loop_footer_branch
    %12 = sbr.rel target = $region3
  $region8: #{single_conv.2} parent=0 // loop_exit
    _

</llo_original>
